<compile_context>
chip_gen: v7x
topology: tpu7x:2x2x1
jax: 0.10.0
libtpu: 0.0.40
codegen_flags: <defaults>
</compile_context>

<pallas_src>
import jax
import jax.numpy as jnp
from jax.experimental import pallas as pl
from jax.experimental.pallas import tpu as pltpu

HIDDEN = 20
N_HEADS = 12


def _round_up(n, m):
    return ((n + m - 1) // m) * m


def _chip_batch_budget():
    """Return (max batch tile, vmem_limit_bytes) for the current chip generation."""
    vmem_cap = 64 * 1024 * 1024  # conservative default = v7x per-TC VMEM
    try:
        info = pltpu.get_tpu_info()
        vmem_cap = int(getattr(info, "vmem_capacity_bytes", vmem_cap))
    except Exception:
        pass
    if vmem_cap >= 100 * 1024 * 1024:      # v5e / v6e: 128 MiB VMEM
        return 8192, 64 * 1024 * 1024
    return 4096, 40 * 1024 * 1024           # v7x: 64 MiB VMEM


def idqn_kernel(x_ref, w1_ref, b1_ref, w2_ref, b2_ref, w3_ref, b3_ref, out_ref):
    hp = jax.lax.Precision.HIGHEST  # HIGH (bf16_3x) is a latency option, see header

    # dense_1 + relu : (TB, size_in) @ (size_in, 20) -> (TB, 20)
    h1 = jnp.dot(x_ref[...], w1_ref[...],
                 preferred_element_type=jnp.float32, precision=hp) + b1_ref[...]
    h1 = jnp.maximum(h1, 0.0)

    # dense_2 + relu : (TB, 20) @ (20, 240) -> (TB, 240)
    h2 = jnp.dot(h1, w2_ref[...],
                 preferred_element_type=jnp.float32, precision=hp) + b2_ref[...]
    h2 = jnp.maximum(h2, 0.0)

    # All 12 heads at once via block-diagonal W3: (TB, 240) @ (240, 12*size_out).
    # Single lane-dense store of the (TB, 12*size_out) output slab.
    out_ref[...] = jnp.dot(h2, w3_ref[...],
                           preferred_element_type=jnp.float32,
                           precision=hp) + b3_ref[...]


def idqn_forward(x, packed_params, *, batch_tile=None):
    """x: (B, size_in) f32 -> (B, 12, size_out) f32.

    out[:, i, :] equals dense_3(chunk_i) of the PyTorch IDQN._forward, where
    chunk i = lanes [20*i, 20*(i+1)) of the dense_2 activation.
    """
    w1, b1, w2, b2, w3_blk, b3_blk = packed_params
    B, size_in = x.shape
    out_dim = w3_blk.shape[1]
    size_out = out_dim // N_HEADS

    tb_cap, vmem_limit = _chip_batch_budget()
    if batch_tile is not None:
        tb_cap = batch_tile

    if B <= 8:
        tb = B                      # single full-batch tile (block == full array)
    else:
        # >= 2 grid steps whenever possible so both v7x TensorCores get work;
        # tb must be a multiple of 8 (sublane constraint on the batch axis).
        tb = min(tb_cap, _round_up(pl.cdiv(B, 2), 8))
        tb = max(8, (tb // 8) * 8)
    grid = (pl.cdiv(B, tb),)

    def resident(shape):
        # Same block every grid step -> stays VMEM-resident (no re-DMA).
        return pl.BlockSpec(shape, lambda i: (0, 0))

    out = pl.pallas_call(
        idqn_kernel,
        out_shape=jax.ShapeDtypeStruct((B, out_dim), jnp.float32),
        grid=grid,
        in_specs=[
            pl.BlockSpec((tb, size_in), lambda i: (i, 0)),     # x, batch-tiled
            resident(w1.shape), resident(b1.shape),
            resident(w2.shape), resident(b2.shape),
            resident(w3_blk.shape), resident(b3_blk.shape),
        ],
        out_specs=pl.BlockSpec((tb, out_dim), lambda i: (i, 0)),
        compiler_params=pltpu.CompilerParams(
            # Batch axis is embarrassingly parallel; lets v7x split it across
            # its 2 TensorCores.
            # TODO(synk): verify on a v7x profile that "parallel" shards the
            # batch axis across both TCs; otherwise switch to CORE_PARALLEL.
            dimension_semantics=("parallel",),
            vmem_limit_bytes=vmem_limit,
        ),
    )(x, w1, b1, w2, b2, w3_blk, b3_blk)

    return out.reshape(B, N_HEADS, size_out)


def init_params(key, size_in, size_out):
    """Deterministic init mimicking nn.Linear's U(-1/sqrt(fan_in), 1/sqrt(fan_in))."""
    def linear(key, fan_in, fan_out):
        kw, kb = jax.random.split(key)
        bound = 1.0 / jnp.sqrt(jnp.float32(fan_in))
        w = jax.random.uniform(kw, (fan_in, fan_out), jnp.float32, -bound, bound)
        b = jax.random.uniform(kb, (1, fan_out), jnp.float32, -bound, bound)
        return w, b

    k1, k2, k3 = jax.random.split(key, 3)
    w1, b1 = linear(k1, size_in, HIDDEN)
    w2, b2 = linear(k2, HIDDEN, HIDDEN * N_HEADS)
    w3, b3 = linear(k3, HIDDEN, size_out)
    return w1, b1, w2, b2, w3, b3


def pack_params(params):
    """One-time packing: fold the shared dense_3 head into a block-diagonal W3.

    Block i of W3_blk occupies rows [20i, 20i+20) x cols [size_out*i,
    size_out*(i+1)), which exactly reproduces the per-chunk head ordering.
    Done once here (not per forward call) so jitted inference doesn't redo it.
    """
    w1, b1, w2, b2, w3, b3 = params
    w3_blk = jax.scipy.linalg.block_diag(*([w3] * N_HEADS))   # (240, 12*size_out)
    b3_blk = jnp.tile(b3, (1, N_HEADS))                        # (1, 12*size_out)
    return w1, b1, w2, b2, w3_blk, b3_blk


def reference_forward(x, params):
    """Pure-JAX mirror of IDQN._forward: list of 12 (B, size_out) arrays."""
    w1, b1, w2, b2, w3, b3 = params
    hp = jax.lax.Precision.HIGHEST
    h1 = jax.nn.relu(jnp.dot(x, w1, precision=hp) + b1)
    h2 = jax.nn.relu(jnp.dot(h1, w2, precision=hp) + b2)
    chunks = jnp.split(h2, N_HEADS, axis=-1)
    return [jnp.dot(c, w3, precision=hp) + b3 for c in chunks]


if __name__ == "__main__":
    SIZE_IN, SIZE_OUT = 16, 4

    key = jax.random.PRNGKey(0)
    k_x, k_p = jax.random.split(key)
    params = init_params(k_p, SIZE_IN, SIZE_OUT)
    packed = pack_params(params)

    # Case 1: small batch, single grid step (block == full array).
    x_small = jax.random.normal(k_x, (8, SIZE_IN), dtype=jnp.float32)
    out_small = jax.block_until_ready(idqn_forward(x_small, packed))
    assert out_small.shape == (8, N_HEADS, SIZE_OUT)

    # Case 2: multi-step grid with a padded final tile (B=20, tb forced to 8):
    # exercises the batch-tiled pipeline + masked writeback of the ragged tile.
    x_big = jax.random.normal(jax.random.PRNGKey(1), (20, SIZE_IN), dtype=jnp.float32)
    out_big = jax.block_until_ready(idqn_forward(x_big, packed, batch_tile=8))
    assert out_big.shape == (20, N_HEADS, SIZE_OUT)

    for x, out in ((x_small, out_small), (x_big, out_big)):
        refs = reference_forward(x, params)
        for i in range(N_HEADS):
            assert refs[i].shape == (x.shape[0], SIZE_OUT)
            assert jnp.allclose(out[:, i, :], refs[i], atol=1e-5, rtol=1e-5)

    print("KERNEL_OK")
</pallas_src>

<mosaic_0001>
module attributes {stable_mosaic.version = 11 : i64} {
  func.func @idqn_kernel(%arg0: i32, %arg1: memref<8x16xf32, #tpu.memory_space<vmem>>, %arg2: memref<16x20xf32, #tpu.memory_space<vmem>>, %arg3: memref<1x20xf32, #tpu.memory_space<vmem>>, %arg4: memref<20x240xf32, #tpu.memory_space<vmem>>, %arg5: memref<1x240xf32, #tpu.memory_space<vmem>>, %arg6: memref<240x48xf32, #tpu.memory_space<vmem>>, %arg7: memref<1x48xf32, #tpu.memory_space<vmem>>, %arg8: memref<8x48xf32, #tpu.memory_space<vmem>>) attributes {dimension_semantics = [#tpu.dimension_semantics<parallel>], iteration_bounds = array<i64: 1>, scalar_prefetch = 0 : i64, scratch_operands = 0 : i64, tpu.core_type = #tpu.core_type<tc>, window_params = [{transform_indices = @transform_0, window_bounds = array<i64: 8, 16>}, {pipeline_mode = #tpu.pipeline_mode<synchronous>, transform_indices = @transform_1, window_bounds = array<i64: 16, 20>}, {pipeline_mode = #tpu.pipeline_mode<synchronous>, transform_indices = @transform_2, window_bounds = array<i64: 1, 20>}, {pipeline_mode = #tpu.pipeline_mode<synchronous>, transform_indices = @transform_3, window_bounds = array<i64: 20, 240>}, {pipeline_mode = #tpu.pipeline_mode<synchronous>, transform_indices = @transform_4, window_bounds = array<i64: 1, 240>}, {pipeline_mode = #tpu.pipeline_mode<synchronous>, transform_indices = @transform_5, window_bounds = array<i64: 240, 48>}, {pipeline_mode = #tpu.pipeline_mode<synchronous>, transform_indices = @transform_6, window_bounds = array<i64: 1, 48>}, {transform_indices = @transform_7, window_bounds = array<i64: 8, 48>}]} {
    %c0 = arith.constant 0 : index
    %c0_0 = arith.constant 0 : index
    %0 = vector.load %arg1[%c0, %c0_0] : memref<8x16xf32, #tpu.memory_space<vmem>>, vector<8x16xf32>
    %c0_1 = arith.constant 0 : index
    %c0_2 = arith.constant 0 : index
    %1 = vector.load %arg2[%c0_1, %c0_2] : memref<16x20xf32, #tpu.memory_space<vmem>>, vector<16x20xf32>
    %cst = arith.constant dense<0.000000e+00> : vector<8x20xf32>
    %2 = tpu.matmul %0, %1, %cst {dimension_numbers = #tpu.dot_dimension_numbers<[1], [0], [0], [1], [0, 0, 1, 1], [], []>, precision = #tpu.contract_precision<fp32>} : vector<8x16xf32>, vector<16x20xf32>, vector<8x20xf32> -> vector<8x20xf32>
    %c0_3 = arith.constant 0 : index
    %c0_4 = arith.constant 0 : index
    %3 = vector.load %arg3[%c0_3, %c0_4] : memref<1x20xf32, #tpu.memory_space<vmem>>, vector<1x20xf32>
    %4 = vector.broadcast %3 : vector<1x20xf32> to vector<8x20xf32>
    %5 = arith.addf %2, %4 : vector<8x20xf32>
    %cst_5 = arith.constant 0.000000e+00 : f32
    %6 = vector.broadcast %cst_5 : f32 to vector<8x20xf32>
    %7 = arith.maximumf %5, %6 : vector<8x20xf32>
    %c0_6 = arith.constant 0 : index
    %c0_7 = arith.constant 0 : index
    %8 = vector.load %arg4[%c0_6, %c0_7] : memref<20x240xf32, #tpu.memory_space<vmem>>, vector<20x240xf32>
    %cst_8 = arith.constant dense<0.000000e+00> : vector<8x240xf32>
    %9 = tpu.matmul %7, %8, %cst_8 {dimension_numbers = #tpu.dot_dimension_numbers<[1], [0], [0], [1], [0, 0, 1, 1], [], []>, precision = #tpu.contract_precision<fp32>} : vector<8x20xf32>, vector<20x240xf32>, vector<8x240xf32> -> vector<8x240xf32>
    %c0_9 = arith.constant 0 : index
    %c0_10 = arith.constant 0 : index
    %10 = vector.load %arg5[%c0_9, %c0_10] : memref<1x240xf32, #tpu.memory_space<vmem>>, vector<1x240xf32>
    %11 = vector.broadcast %10 : vector<1x240xf32> to vector<8x240xf32>
    %12 = arith.addf %9, %11 : vector<8x240xf32>
    %cst_11 = arith.constant 0.000000e+00 : f32
    %13 = vector.broadcast %cst_11 : f32 to vector<8x240xf32>
    %14 = arith.maximumf %12, %13 : vector<8x240xf32>
    %c0_12 = arith.constant 0 : index
    %c0_13 = arith.constant 0 : index
    %15 = vector.load %arg6[%c0_12, %c0_13] : memref<240x48xf32, #tpu.memory_space<vmem>>, vector<240x48xf32>
    %cst_14 = arith.constant dense<0.000000e+00> : vector<8x48xf32>
    %16 = tpu.matmul %14, %15, %cst_14 {dimension_numbers = #tpu.dot_dimension_numbers<[1], [0], [0], [1], [0, 0, 1, 1], [], []>, precision = #tpu.contract_precision<fp32>} : vector<8x240xf32>, vector<240x48xf32>, vector<8x48xf32> -> vector<8x48xf32>
    %c0_15 = arith.constant 0 : index
    %c0_16 = arith.constant 0 : index
    %17 = vector.load %arg7[%c0_15, %c0_16] : memref<1x48xf32, #tpu.memory_space<vmem>>, vector<1x48xf32>
    %18 = vector.broadcast %17 : vector<1x48xf32> to vector<8x48xf32>
    %19 = arith.addf %16, %18 : vector<8x48xf32>
    %c0_17 = arith.constant 0 : index
    %c0_18 = arith.constant 0 : index
    %20 = vector.load %arg8[%c0_17, %c0_18] : memref<8x48xf32, #tpu.memory_space<vmem>>, vector<8x48xf32>
    tpu.vector_store %arg8[%c0_17, %c0_18], %19 {strides = array<i32>} : memref<8x48xf32, #tpu.memory_space<vmem>>, vector<8x48xf32>,
    return
  }
  func.func @transform_0(%arg0: i32) -> (i32, i32) {
    %c0_i32 = arith.constant 0 : i32
    %c0_i32_0 = arith.constant 0 : i32
    return %arg0, %c0_i32 : i32, i32
  }
  func.func @transform_1(%arg0: i32) -> (i32, i32) {
    %c0_i32 = arith.constant 0 : i32
    %c0_i32_0 = arith.constant 0 : i32
    %c0_i32_1 = arith.constant 0 : i32
    return %c0_i32, %c0_i32_0 : i32, i32
  }
  func.func @transform_2(%arg0: i32) -> (i32, i32) {
    %c0_i32 = arith.constant 0 : i32
    %c0_i32_0 = arith.constant 0 : i32
    %c0_i32_1 = arith.constant 0 : i32
    return %c0_i32, %c0_i32_0 : i32, i32
  }
  func.func @transform_3(%arg0: i32) -> (i32, i32) {
    %c0_i32 = arith.constant 0 : i32
    %c0_i32_0 = arith.constant 0 : i32
    %c0_i32_1 = arith.constant 0 : i32
    return %c0_i32, %c0_i32_0 : i32, i32
  }
  func.func @transform_4(%arg0: i32) -> (i32, i32) {
    %c0_i32 = arith.constant 0 : i32
    %c0_i32_0 = arith.constant 0 : i32
    %c0_i32_1 = arith.constant 0 : i32
    return %c0_i32, %c0_i32_0 : i32, i32
  }
  func.func @transform_5(%arg0: i32) -> (i32, i32) {
    %c0_i32 = arith.constant 0 : i32
    %c0_i32_0 = arith.constant 0 : i32
    %c0_i32_1 = arith.constant 0 : i32
    return %c0_i32, %c0_i32_0 : i32, i32
  }
  func.func @transform_6(%arg0: i32) -> (i32, i32) {
    %c0_i32 = arith.constant 0 : i32
    %c0_i32_0 = arith.constant 0 : i32
    %c0_i32_1 = arith.constant 0 : i32
    return %c0_i32, %c0_i32_0 : i32, i32
  }
  func.func @transform_7(%arg0: i32) -> (i32, i32) {
    %c0_i32 = arith.constant 0 : i32
    %c0_i32_0 = arith.constant 0 : i32
    return %arg0, %c0_i32 : i32, i32
  }
}

</mosaic_0001>

<llo_original>
// kernel: tpu_custom_call.1
$region0: #{tpu_custom_call.1}
  #allocation0 [shape = 'u32[]', space=smem, size = 0x4, offset = 0x4, fixed_abs, tag = 'smem constant byte address 0x4 - core index']
  #allocation1 [shape = 'u32[144,128]{1,0:T(1,128)}', space=vmem, size = 0x12000, scoped, tag = 'internal scratch']
  %s0 = inlined_call_operand.vmem [shape: f32[8,16], index: 0, kind: input, shape index: {}]
  %s1 = inlined_call_operand.vmem [shape: f32[16,20], index: 1, kind: input, shape index: {}]
  %s2 = inlined_call_operand.vmem [shape: f32[1,20], index: 2, kind: input, shape index: {}]
  %s3 = inlined_call_operand.vmem [shape: f32[20,240], index: 3, kind: input, shape index: {}]
  %s4 = inlined_call_operand.vmem [shape: f32[1,240], index: 4, kind: input, shape index: {}]
  %s5 = inlined_call_operand.vmem [shape: f32[240,48], index: 5, kind: input, shape index: {}]
  %s6 = inlined_call_operand.vmem [shape: f32[1,48], index: 6, kind: input, shape index: {}]
  %s7 = inlined_call_operand.hbm [shape: f32[8,48], index: 7, kind: output, shape index: {}]
  %s8 = sld [smem:[#allocation0]]
  $region38: #{tpu_custom_call.1} parent=0
    _
  %s10 = ssub.s32 1, %s8
  %s11 = scalar_select 0, %s10, %s8
  $region1: #{tpu_custom_call.1} parent=0
    #allocation2 [shape = 'u8[4096]{0}', space=vmem, size = 0x1000, scoped, tag = 'output window, operand 0, single buffered']
    #allocation3 [shape = 's32[1]{0}', space=sflag, size = 0x4, scoped, tag = 'scoped memory for tpu_custom_call.1']
    %12 = vsyncpa [#allocation3], 0
    // Predicated region
    $region2: #{tpu_custom_call.1} parent=1 // pred_check
      _
    $region3: #{tpu_custom_call.1} parent=1 // pred_check_branch
      %14 = sbr.rel (0) target = $region5
    $region4: #{tpu_custom_call.1} parent=1 // pred_region
      _
    $region5: #{tpu_custom_call.1} parent=1 // pred_fallthru
      _
    // Predicated region
    $region6: #{tpu_custom_call.1} parent=1 // pred_check
      _
    $region7: #{tpu_custom_call.1} parent=1 // pred_check_branch
      %16 = sbr.rel (0) target = $region9
    $region8: #{tpu_custom_call.1} parent=1 // pred_region
      _
    $region9: #{tpu_custom_call.1} parent=1 // pred_fallthru
      _
    // Predicated region
    $region10: #{tpu_custom_call.1} parent=1 // pred_check
      _
    $region11: #{tpu_custom_call.1} parent=1 // pred_check_branch
      %18 = sbr.rel (0) target = $region13
    $region12: #{tpu_custom_call.1} parent=1 // pred_region
      _
    $region13: #{tpu_custom_call.1} parent=1 // pred_fallthru
      _
    // Predicated region
    $region14: #{tpu_custom_call.1} parent=1 // pred_check
      _
    $region15: #{tpu_custom_call.1} parent=1 // pred_check_branch
      %20 = sbr.rel (0) target = $region17
    $region16: #{tpu_custom_call.1} parent=1 // pred_region
      _
    $region17: #{tpu_custom_call.1} parent=1 // pred_fallthru
      _
    // Predicated region
    $region18: #{tpu_custom_call.1} parent=1 // pred_check
      _
    $region19: #{tpu_custom_call.1} parent=1 // pred_check_branch
      %22 = sbr.rel (0) target = $region21
    $region20: #{tpu_custom_call.1} parent=1 // pred_region
      _
    $region21: #{tpu_custom_call.1} parent=1 // pred_fallthru
      _
    // Predicated region
    $region22: #{tpu_custom_call.1} parent=1 // pred_check
      _
    $region23: #{tpu_custom_call.1} parent=1 // pred_check_branch
      %24 = sbr.rel (0) target = $region25
    $region24: #{tpu_custom_call.1} parent=1 // pred_region
      _
    $region25: #{tpu_custom_call.1} parent=1 // pred_fallthru
      _
    // Predicated region
    $region26: #{tpu_custom_call.1} parent=1 // pred_check
      _
    $region27: #{tpu_custom_call.1} parent=1 // pred_check_branch
      %26 = sbr.rel (0) target = $region29
    $region28: #{tpu_custom_call.1} parent=1 // pred_region
      _
    $region29: #{tpu_custom_call.1} parent=1 // pred_fallthru
      _
    %v27 = vld [vmem:[%s0] sm:$0xff]
    %v28 = vld [vmem:[%s1] sm:$0xff]
    %v29 = vld [vmem:[%s1 + $0x8] sm:$0xff]
    %v30 = vld [vmem:[%s2] sm:$0x1]
    %v32 = vlaneseq
    %v33 = vshrl.u32 %v32, 7
    %v34 = vsub.s32 0, %v33
    %v35 = vrot.slane %v30, %v34
    %vm37 = vcmask 130048
    %v39 = vsel %vm37, %v27, 0
    %41 = vmatprep.subr.mxu0 0.0
    %v42 = vand.u32 %v28, 4294901760
    %43 = vmatpush1.msra.mxu0 %v42
    %44 = vmatprep.subr.mxu0 0.0
    %v45 = vand.u32 %v29, 4294901760
    %46 = vmatpush1.msra.mxu0 %v45
    %47 = vmatprep.subr.mxu0 0.0
    %48 = vmatpush1.msra.mxu0 0.0
    %49 = vmatprep.subr.mxu0 0.0
    %50 = vmatpush1.msra.mxu0 0.0
    %51 = vmatprep.subr.mxu0 0.0
    %52 = vmatpush1.msra.mxu0 0.0
    %53 = vmatprep.subr.mxu0 0.0
    %54 = vmatpush1.msra.mxu0 0.0
    %55 = vmatprep.subr.mxu0 0.0
    %56 = vmatpush1.msra.mxu0 0.0
    %57 = vmatprep.subr.mxu0 0.0
    %58 = vmatpush1.msra.mxu0 0.0
    %59 = vmatprep.subr.mxu0 0.0
    %60 = vmatpush1.msra.mxu0 0.0
    %61 = vmatprep.subr.mxu0 0.0
    %62 = vmatpush1.msra.mxu0 0.0
    %63 = vmatprep.subr.mxu0 0.0
    %64 = vmatpush1.msra.mxu0 0.0
    %65 = vmatprep.subr.mxu0 0.0
    %66 = vmatpush1.msra.mxu0 0.0
    %67 = vmatprep.subr.mxu0 0.0
    %68 = vmatpush1.msra.mxu0 0.0
    %69 = vmatprep.subr.mxu0 0.0
    %70 = vmatpush1.msra.mxu0 0.0
    %71 = vmatprep.subr.mxu0 0.0
    %72 = vmatpush1.msra.mxu0 0.0
    %73 = vmatprep.subr.mxu0 0.0
    %74 = vmatpush1.msra.mxu0 0.0
    %75 = vmatprep.subr.mxu0 0.0
    %76 = vmatpush1.msra.mxu0 0.0
    %77 = vmatprep.subr.mxu0 0.0
    %78 = vmatpush1.msra.mxu0 0.0
    %79 = vmatprep.subr.mxu0 0.0
    %80 = vmatpush1.msra.mxu0 0.0
    %81 = vmatprep.subr.mxu0 0.0
    %82 = vmatpush1.msra.mxu0 0.0
    %83 = vmatprep.subr.mxu0 0.0
    %84 = vmatpush1.msra.mxu0 0.0
    %85 = vmatprep.subr.mxu0 0.0
    %86 = vmatpush1.msra.mxu0 0.0
    %87 = vmatprep.subr.mxu0 0.0
    %88 = vmatpush1.msra.mxu0 0.0
    %89 = vmatprep.subr.mxu0 0.0
    %90 = vmatpush1.msra.mxu0 0.0
    %91 = vmatprep.subr.mxu0 0.0
    %92 = vmatpush1.msra.mxu0 0.0
    %93 = vmatprep.subr.mxu0 0.0
    %94 = vmatpush1.msra.mxu0 0.0
    %95 = vmatprep.subr.mxu0 0.0
    %96 = vmatpush1.msra.mxu0 0.0
    %97 = vmatprep.subr.mxu0 0.0
    %98 = vmatpush1.msra.mxu0 0.0
    %99 = vmatprep.subr.mxu0 0.0
    %100 = vmatpush1.msra.mxu0 0.0
    %101 = vmatprep.subr.mxu0 0.0
    %102 = vmatpush1.msra.mxu0 0.0
    %103 = vmatprep.subr.mxu0 0.0
    %104 = vmatpush1.msra.mxu0 0.0
    %105 = vmatprep.subr.mxu0 0.0
    %106 = vmatpush1.msra.mxu0 0.0
    %107 = vmatprep.mubr.f32.mxu0 0.0
    %v108 = vand.u32 %v39, 4294901760
    %v109 = vsub.f32 %v39, %v108
    %v110 = vand.u32 %v109, 4294901760
    %v111 = vsub.f32 %v109, %v110
    %v112 = vand.u32 %v111, 4294901760
    %113 = vmatmul.mubr.f32.gmra.mrb[0].mxu0 %v112
    %v114 = vpop.f32.mrb[0].mxu0
    %v115 = vadd.f32 %v35, %v114
    %v116 = vpop.f32.mrb[0].mxu0
    %117 = vdwg.mxu0
    %118 = vmatprep.subr.mxu0 0.0
    %v119 = vand.u32 %v28, 4294901760
    %v120 = vsub.f32 %v28, %v119
    %v121 = vand.u32 %v120, 4294901760
    %v122 = vsub.f32 %v120, %v121
    %v123 = vand.u32 %v122, 4294901760
    %124 = vmatpush1.msra.mxu0 %v123
    %125 = vmatprep.subr.mxu0 0.0
    %v126 = vand.u32 %v29, 4294901760
    %v127 = vsub.f32 %v29, %v126
    %v128 = vand.u32 %v127, 4294901760
    %v129 = vsub.f32 %v127, %v128
    %v130 = vand.u32 %v129, 4294901760
    %131 = vmatpush1.msra.mxu0 %v130
    %132 = vmatprep.subr.mxu0 0.0
    %133 = vmatpush1.msra.mxu0 0.0
    %134 = vmatprep.subr.mxu0 0.0
    %135 = vmatpush1.msra.mxu0 0.0
    %136 = vmatprep.subr.mxu0 0.0
    %137 = vmatpush1.msra.mxu0 0.0
    %138 = vmatprep.subr.mxu0 0.0
    %139 = vmatpush1.msra.mxu0 0.0
    %140 = vmatprep.subr.mxu0 0.0
    %141 = vmatpush1.msra.mxu0 0.0
    %142 = vmatprep.subr.mxu0 0.0
    %143 = vmatpush1.msra.mxu0 0.0
    %144 = vmatprep.subr.mxu0 0.0
    %145 = vmatpush1.msra.mxu0 0.0
    %146 = vmatprep.subr.mxu0 0.0
    %147 = vmatpush1.msra.mxu0 0.0
    %148 = vmatprep.subr.mxu0 0.0
    %149 = vmatpush1.msra.mxu0 0.0
    %150 = vmatprep.subr.mxu0 0.0
    %151 = vmatpush1.msra.mxu0 0.0
    %152 = vmatprep.subr.mxu0 0.0
    %153 = vmatpush1.msra.mxu0 0.0
    %154 = vmatprep.subr.mxu0 0.0
    %155 = vmatpush1.msra.mxu0 0.0
    %156 = vmatprep.subr.mxu0 0.0
    %157 = vmatpush1.msra.mxu0 0.0
    %158 = vmatprep.subr.mxu0 0.0
    %159 = vmatpush1.msra.mxu0 0.0
    %160 = vmatprep.subr.mxu0 0.0
    %161 = vmatpush1.msra.mxu0 0.0
    %162 = vmatprep.subr.mxu0 0.0
    %163 = vmatpush1.msra.mxu0 0.0
    %164 = vmatprep.subr.mxu0 0.0
    %165 = vmatpush1.msra.mxu0 0.0
    %166 = vmatprep.subr.mxu0 0.0
    %167 = vmatpush1.msra.mxu0 0.0
    %168 = vmatprep.subr.mxu0 0.0
    %169 = vmatpush1.msra.mxu0 0.0
    %170 = vmatprep.subr.mxu0 0.0
    %171 = vmatpush1.msra.mxu0 0.0
    %172 = vmatprep.subr.mxu0 0.0
    %173 = vmatpush1.msra.mxu0 0.0
    %174 = vmatprep.subr.mxu0 0.0
    %175 = vmatpush1.msra.mxu0 0.0
    %176 = vmatprep.subr.mxu0 0.0
    %177 = vmatpush1.msra.mxu0 0.0
    %178 = vmatprep.subr.mxu0 0.0
    %179 = vmatpush1.msra.mxu0 0.0
    %180 = vmatprep.subr.mxu0 0.0
    %181 = vmatpush1.msra.mxu0 0.0
    %182 = vmatprep.subr.mxu0 0.0
    %183 = vmatpush1.msra.mxu0 0.0
    %184 = vmatprep.subr.mxu0 0.0
    %185 = vmatpush1.msra.mxu0 0.0
    %186 = vmatprep.subr.mxu0 0.0
    %187 = vmatpush1.msra.mxu0 0.0
    %188 = vmatprep.subr.mxu0 0.0
    %189 = vmatpush1.msra.mxu0 0.0
    %190 = vmatprep.subr.mxu0 0.0
    %191 = vmatpush1.msra.mxu0 0.0
    %192 = vmatprep.mubr.f32.mxu0 0.0
    %v193 = vand.u32 %v39, 4294901760
    %194 = vmatmul.mubr.f32.gmra.mrb[0].mxu0 %v193
    %v195 = vpop.f32.mrb[0].mxu0
    %v196 = vadd.f32 %v115, %v195
    %v197 = vpop.f32.mrb[0].mxu0
    %198 = vdwg.mxu0
    %199 = vmatprep.subr.mxu0 0.0
    %v200 = vand.u32 %v28, 4294901760
    %v201 = vsub.f32 %v28, %v200
    %202 = vmatpush1.msra.mxu0 %v201
    %203 = vmatprep.subr.mxu0 0.0
    %v204 = vand.u32 %v29, 4294901760
    %v205 = vsub.f32 %v29, %v204
    %206 = vmatpush1.msra.mxu0 %v205
    %207 = vmatprep.subr.mxu0 0.0
    %208 = vmatpush1.msra.mxu0 0.0
    %209 = vmatprep.subr.mxu0 0.0
    %210 = vmatpush1.msra.mxu0 0.0
    %211 = vmatprep.subr.mxu0 0.0
    %212 = vmatpush1.msra.mxu0 0.0
    %213 = vmatprep.subr.mxu0 0.0
    %214 = vmatpush1.msra.mxu0 0.0
    %215 = vmatprep.subr.mxu0 0.0
    %216 = vmatpush1.msra.mxu0 0.0
    %217 = vmatprep.subr.mxu0 0.0
    %218 = vmatpush1.msra.mxu0 0.0
    %219 = vmatprep.subr.mxu0 0.0
    %220 = vmatpush1.msra.mxu0 0.0
    %221 = vmatprep.subr.mxu0 0.0
    %222 = vmatpush1.msra.mxu0 0.0
    %223 = vmatprep.subr.mxu0 0.0
    %224 = vmatpush1.msra.mxu0 0.0
    %225 = vmatprep.subr.mxu0 0.0
    %226 = vmatpush1.msra.mxu0 0.0
    %227 = vmatprep.subr.mxu0 0.0
    %228 = vmatpush1.msra.mxu0 0.0
    %229 = vmatprep.subr.mxu0 0.0
    %230 = vmatpush1.msra.mxu0 0.0
    %231 = vmatprep.subr.mxu0 0.0
    %232 = vmatpush1.msra.mxu0 0.0
    %233 = vmatprep.subr.mxu0 0.0
    %234 = vmatpush1.msra.mxu0 0.0
    %235 = vmatprep.subr.mxu0 0.0
    %236 = vmatpush1.msra.mxu0 0.0
    %237 = vmatprep.subr.mxu0 0.0
    %238 = vmatpush1.msra.mxu0 0.0
    %239 = vmatprep.subr.mxu0 0.0
    %240 = vmatpush1.msra.mxu0 0.0
    %241 = vmatprep.subr.mxu0 0.0
    %242 = vmatpush1.msra.mxu0 0.0
    %243 = vmatprep.subr.mxu0 0.0
    %244 = vmatpush1.msra.mxu0 0.0
    %245 = vmatprep.subr.mxu0 0.0
    %246 = vmatpush1.msra.mxu0 0.0
    %247 = vmatprep.subr.mxu0 0.0
    %248 = vmatpush1.msra.mxu0 0.0
    %249 = vmatprep.subr.mxu0 0.0
    %250 = vmatpush1.msra.mxu0 0.0
    %251 = vmatprep.subr.mxu0 0.0
    %252 = vmatpush1.msra.mxu0 0.0
    %253 = vmatprep.subr.mxu0 0.0
    %254 = vmatpush1.msra.mxu0 0.0
    %255 = vmatprep.subr.mxu0 0.0
    %256 = vmatpush1.msra.mxu0 0.0
    %257 = vmatprep.subr.mxu0 0.0
    %258 = vmatpush1.msra.mxu0 0.0
    %259 = vmatprep.subr.mxu0 0.0
    %260 = vmatpush1.msra.mxu0 0.0
    %261 = vmatprep.subr.mxu0 0.0
    %262 = vmatpush1.msra.mxu0 0.0
    %263 = vmatprep.subr.mxu0 0.0
    %264 = vmatpush1.msra.mxu0 0.0
    %265 = vmatprep.subr.mxu0 0.0
    %266 = vmatpush1.msra.mxu0 0.0
    %267 = vmatprep.mubr.f32.mxu0 0.0
    %v268 = vand.u32 %v39, 4294901760
    %v269 = vsub.f32 %v39, %v268
    %270 = vmatmul.mubr.f32.gmra.mrb[0].mxu0 %v269
    %v271 = vpop.f32.mrb[0].mxu0
    %v272 = vadd.f32 %v196, %v271
    %v273 = vpop.f32.mrb[0].mxu0
    %274 = vdwg.mxu0
    %275 = vmatprep.subr.mxu0 0.0
    %v276 = vand.u32 %v28, 4294901760
    %277 = vmatpush1.msra.mxu0 %v276
    %278 = vmatprep.subr.mxu0 0.0
    %v279 = vand.u32 %v29, 4294901760
    %280 = vmatpush1.msra.mxu0 %v279
    %281 = vmatprep.subr.mxu0 0.0
    %282 = vmatpush1.msra.mxu0 0.0
    %283 = vmatprep.subr.mxu0 0.0
    %284 = vmatpush1.msra.mxu0 0.0
    %285 = vmatprep.subr.mxu0 0.0
    %286 = vmatpush1.msra.mxu0 0.0
    %287 = vmatprep.subr.mxu0 0.0
    %288 = vmatpush1.msra.mxu0 0.0
    %289 = vmatprep.subr.mxu0 0.0
    %290 = vmatpush1.msra.mxu0 0.0
    %291 = vmatprep.subr.mxu0 0.0
    %292 = vmatpush1.msra.mxu0 0.0
    %293 = vmatprep.subr.mxu0 0.0
    %294 = vmatpush1.msra.mxu0 0.0
    %295 = vmatprep.subr.mxu0 0.0
    %296 = vmatpush1.msra.mxu0 0.0
    %297 = vmatprep.subr.mxu0 0.0
    %298 = vmatpush1.msra.mxu0 0.0
    %299 = vmatprep.subr.mxu0 0.0
    %300 = vmatpush1.msra.mxu0 0.0
    %301 = vmatprep.subr.mxu0 0.0
    %302 = vmatpush1.msra.mxu0 0.0
    %303 = vmatprep.subr.mxu0 0.0
    %304 = vmatpush1.msra.mxu0 0.0
    %305 = vmatprep.subr.mxu0 0.0
    %306 = vmatpush1.msra.mxu0 0.0
    %307 = vmatprep.subr.mxu0 0.0
    %308 = vmatpush1.msra.mxu0 0.0
    %309 = vmatprep.subr.mxu0 0.0
    %310 = vmatpush1.msra.mxu0 0.0
    %311 = vmatprep.subr.mxu0 0.0
    %312 = vmatpush1.msra.mxu0 0.0
    %313 = vmatprep.subr.mxu0 0.0
    %314 = vmatpush1.msra.mxu0 0.0
    %315 = vmatprep.subr.mxu0 0.0
    %316 = vmatpush1.msra.mxu0 0.0
    %317 = vmatprep.subr.mxu0 0.0
    %318 = vmatpush1.msra.mxu0 0.0
    %319 = vmatprep.subr.mxu0 0.0
    %320 = vmatpush1.msra.mxu0 0.0
    %321 = vmatprep.subr.mxu0 0.0
    %322 = vmatpush1.msra.mxu0 0.0
    %323 = vmatprep.subr.mxu0 0.0
    %324 = vmatpush1.msra.mxu0 0.0
    %325 = vmatprep.subr.mxu0 0.0
    %326 = vmatpush1.msra.mxu0 0.0
    %327 = vmatprep.subr.mxu0 0.0
    %328 = vmatpush1.msra.mxu0 0.0
    %329 = vmatprep.subr.mxu0 0.0
    %330 = vmatpush1.msra.mxu0 0.0
    %331 = vmatprep.subr.mxu0 0.0
    %332 = vmatpush1.msra.mxu0 0.0
    %333 = vmatprep.subr.mxu0 0.0
    %334 = vmatpush1.msra.mxu0 0.0
    %335 = vmatprep.subr.mxu0 0.0
    %336 = vmatpush1.msra.mxu0 0.0
    %337 = vmatprep.subr.mxu0 0.0
    %338 = vmatpush1.msra.mxu0 0.0
    %339 = vmatprep.subr.mxu0 0.0
    %340 = vmatpush1.msra.mxu0 0.0
    %341 = vmatprep.mubr.f32.mxu0 0.0
    %v342 = vand.u32 %v39, 4294901760
    %v343 = vsub.f32 %v39, %v342
    %v344 = vand.u32 %v343, 4294901760
    %345 = vmatmul.mubr.f32.gmra.mrb[0].mxu0 %v344
    %v346 = vpop.f32.mrb[0].mxu0
    %v347 = vadd.f32 %v272, %v346
    %v348 = vpop.f32.mrb[0].mxu0
    %349 = vdwg.mxu0
    %350 = vmatprep.subr.mxu0 0.0
    %v351 = vand.u32 %v28, 4294901760
    %v352 = vsub.f32 %v28, %v351
    %v353 = vand.u32 %v352, 4294901760
    %354 = vmatpush1.msra.mxu0 %v353
    %355 = vmatprep.subr.mxu0 0.0
    %v356 = vand.u32 %v29, 4294901760
    %v357 = vsub.f32 %v29, %v356
    %v358 = vand.u32 %v357, 4294901760
    %359 = vmatpush1.msra.mxu0 %v358
    %360 = vmatprep.subr.mxu0 0.0
    %361 = vmatpush1.msra.mxu0 0.0
    %362 = vmatprep.subr.mxu0 0.0
    %363 = vmatpush1.msra.mxu0 0.0
    %364 = vmatprep.subr.mxu0 0.0
    %365 = vmatpush1.msra.mxu0 0.0
    %366 = vmatprep.subr.mxu0 0.0
    %367 = vmatpush1.msra.mxu0 0.0
    %368 = vmatprep.subr.mxu0 0.0
    %369 = vmatpush1.msra.mxu0 0.0
    %370 = vmatprep.subr.mxu0 0.0
    %371 = vmatpush1.msra.mxu0 0.0
    %372 = vmatprep.subr.mxu0 0.0
    %373 = vmatpush1.msra.mxu0 0.0
    %374 = vmatprep.subr.mxu0 0.0
    %375 = vmatpush1.msra.mxu0 0.0
    %376 = vmatprep.subr.mxu0 0.0
    %377 = vmatpush1.msra.mxu0 0.0
    %378 = vmatprep.subr.mxu0 0.0
    %379 = vmatpush1.msra.mxu0 0.0
    %380 = vmatprep.subr.mxu0 0.0
    %381 = vmatpush1.msra.mxu0 0.0
    %382 = vmatprep.subr.mxu0 0.0
    %383 = vmatpush1.msra.mxu0 0.0
    %384 = vmatprep.subr.mxu0 0.0
    %385 = vmatpush1.msra.mxu0 0.0
    %386 = vmatprep.subr.mxu0 0.0
    %387 = vmatpush1.msra.mxu0 0.0
    %388 = vmatprep.subr.mxu0 0.0
    %389 = vmatpush1.msra.mxu0 0.0
    %390 = vmatprep.subr.mxu0 0.0
    %391 = vmatpush1.msra.mxu0 0.0
    %392 = vmatprep.subr.mxu0 0.0
    %393 = vmatpush1.msra.mxu0 0.0
    %394 = vmatprep.subr.mxu0 0.0
    %395 = vmatpush1.msra.mxu0 0.0
    %396 = vmatprep.subr.mxu0 0.0
    %397 = vmatpush1.msra.mxu0 0.0
    %398 = vmatprep.subr.mxu0 0.0
    %399 = vmatpush1.msra.mxu0 0.0
    %400 = vmatprep.subr.mxu0 0.0
    %401 = vmatpush1.msra.mxu0 0.0
    %402 = vmatprep.subr.mxu0 0.0
    %403 = vmatpush1.msra.mxu0 0.0
    %404 = vmatprep.subr.mxu0 0.0
    %405 = vmatpush1.msra.mxu0 0.0
    %406 = vmatprep.subr.mxu0 0.0
    %407 = vmatpush1.msra.mxu0 0.0
    %408 = vmatprep.subr.mxu0 0.0
    %409 = vmatpush1.msra.mxu0 0.0
    %410 = vmatprep.subr.mxu0 0.0
    %411 = vmatpush1.msra.mxu0 0.0
    %412 = vmatprep.subr.mxu0 0.0
    %413 = vmatpush1.msra.mxu0 0.0
    %414 = vmatprep.subr.mxu0 0.0
    %415 = vmatpush1.msra.mxu0 0.0
    %416 = vmatprep.subr.mxu0 0.0
    %417 = vmatpush1.msra.mxu0 0.0
    %418 = vmatprep.subr.mxu0 0.0
    %419 = vmatpush1.msra.mxu0 0.0
    %420 = vmatprep.mubr.f32.mxu0 0.0
    %v421 = vand.u32 %v39, 4294901760
    %422 = vmatmul.mubr.f32.gmra.mrb[0].mxu0 %v421
    %v423 = vpop.f32.mrb[0].mxu0
    %v424 = vadd.f32 %v347, %v423
    %v425 = vpop.f32.mrb[0].mxu0
    %426 = vdwg.mxu0
    %427 = vmatprep.subr.mxu0 0.0
    %v428 = vand.u32 %v28, 4294901760
    %429 = vmatpush1.msra.mxu0 %v428
    %430 = vmatprep.subr.mxu0 0.0
    %v431 = vand.u32 %v29, 4294901760
    %432 = vmatpush1.msra.mxu0 %v431
    %433 = vmatprep.subr.mxu0 0.0
    %434 = vmatpush1.msra.mxu0 0.0
    %435 = vmatprep.subr.mxu0 0.0
    %436 = vmatpush1.msra.mxu0 0.0
    %437 = vmatprep.subr.mxu0 0.0
    %438 = vmatpush1.msra.mxu0 0.0
    %439 = vmatprep.subr.mxu0 0.0
    %440 = vmatpush1.msra.mxu0 0.0
    %441 = vmatprep.subr.mxu0 0.0
    %442 = vmatpush1.msra.mxu0 0.0
    %443 = vmatprep.subr.mxu0 0.0
    %444 = vmatpush1.msra.mxu0 0.0
    %445 = vmatprep.subr.mxu0 0.0
    %446 = vmatpush1.msra.mxu0 0.0
    %447 = vmatprep.subr.mxu0 0.0
    %448 = vmatpush1.msra.mxu0 0.0
    %449 = vmatprep.subr.mxu0 0.0
    %450 = vmatpush1.msra.mxu0 0.0
    %451 = vmatprep.subr.mxu0 0.0
    %452 = vmatpush1.msra.mxu0 0.0
    %453 = vmatprep.subr.mxu0 0.0
    %454 = vmatpush1.msra.mxu0 0.0
    %455 = vmatprep.subr.mxu0 0.0
    %456 = vmatpush1.msra.mxu0 0.0
    %457 = vmatprep.subr.mxu0 0.0
    %458 = vmatpush1.msra.mxu0 0.0
    %459 = vmatprep.subr.mxu0 0.0
    %460 = vmatpush1.msra.mxu0 0.0
    %461 = vmatprep.subr.mxu0 0.0
    %462 = vmatpush1.msra.mxu0 0.0
    %463 = vmatprep.subr.mxu0 0.0
    %464 = vmatpush1.msra.mxu0 0.0
    %465 = vmatprep.subr.mxu0 0.0
    %466 = vmatpush1.msra.mxu0 0.0
    %467 = vmatprep.subr.mxu0 0.0
    %468 = vmatpush1.msra.mxu0 0.0
    %469 = vmatprep.subr.mxu0 0.0
    %470 = vmatpush1.msra.mxu0 0.0
    %471 = vmatprep.subr.mxu0 0.0
    %472 = vmatpush1.msra.mxu0 0.0
    %473 = vmatprep.subr.mxu0 0.0
    %474 = vmatpush1.msra.mxu0 0.0
    %475 = vmatprep.subr.mxu0 0.0
    %476 = vmatpush1.msra.mxu0 0.0
    %477 = vmatprep.subr.mxu0 0.0
    %478 = vmatpush1.msra.mxu0 0.0
    %479 = vmatprep.subr.mxu0 0.0
    %480 = vmatpush1.msra.mxu0 0.0
    %481 = vmatprep.subr.mxu0 0.0
    %482 = vmatpush1.msra.mxu0 0.0
    %483 = vmatprep.subr.mxu0 0.0
    %484 = vmatpush1.msra.mxu0 0.0
    %485 = vmatprep.subr.mxu0 0.0
    %486 = vmatpush1.msra.mxu0 0.0
    %487 = vmatprep.subr.mxu0 0.0
    %488 = vmatpush1.msra.mxu0 0.0
    %489 = vmatprep.subr.mxu0 0.0
    %490 = vmatpush1.msra.mxu0 0.0
    %491 = vmatprep.subr.mxu0 0.0
    %492 = vmatpush1.msra.mxu0 0.0
    %493 = vmatprep.mubr.f32.mxu0 0.0
    %v494 = vand.u32 %v39, 4294901760
    %495 = vmatmul.mubr.f32.gmra.mrb[0].mxu0 %v494
    %v496 = vpop.f32.mrb[0].mxu0
    %v497 = vadd.f32 %v424, %v496
    %v498 = vpop.f32.mrb[0].mxu0
    %499 = vdwg.mxu0
    %v500 = vmax.f32 %v497, 0.0
    %v501 = vld [vmem:[%s3] sm:$0xff]
    %v502 = vld [vmem:[%s3 + $0x8] sm:$0xff]
    %v503 = vld [vmem:[%s3 + $0x10] sm:$0xff]
    %v504 = vld [vmem:[%s3 + $0x18] sm:$0xff]
    %v505 = vld [vmem:[%s3 + $0x20] sm:$0xf]
    %v506 = vld [vmem:[%s3 + $0x28] sm:$0xf]
    %v507 = vld [vmem:[%s4] sm:$0x3]
    %v509 = vlaneseq
    %v510 = vshrl.u32 %v509, 7
    %v511 = vsub.s32 0, %v510
    %v512 = vrot.slane %v507, %v511
    %v513 = vlaneseq
    %v514 = vshrl.u32 %v513, 7
    %v515 = vsub.s32 1, %v514
    %v516 = vrot.slane %v507, %v515
    %vm519 = vcmask 162816
    %v521 = vsel %vm519, %v500, 0
    %vm523 = vcmask 1043456
    %v525 = vsel %vm523, %v505, 0
    %v528 = vsel %vm523, %v506, 0
    %v530 = vand.u32 %v502, 4294901760
    %531 = vmatprep.subr.mxu0 %v530
    %v532 = vand.u32 %v501, 4294901760
    %533 = vmatpush1.msra.mxu0 %v532
    %v534 = vand.u32 %v504, 4294901760
    %535 = vmatprep.subr.mxu0 %v534
    %v536 = vand.u32 %v503, 4294901760
    %537 = vmatpush1.msra.mxu0 %v536
    %v538 = vand.u32 %v528, 4294901760
    %539 = vmatprep.subr.mxu0 %v538
    %v540 = vand.u32 %v525, 4294901760
    %541 = vmatpush1.msra.mxu0 %v540
    %542 = vmatprep.subr.mxu0 0.0
    %543 = vmatpush1.msra.mxu0 0.0
    %544 = vmatprep.subr.mxu0 0.0
    %545 = vmatpush1.msra.mxu0 0.0
    %546 = vmatprep.subr.mxu0 0.0
    %547 = vmatpush1.msra.mxu0 0.0
    %548 = vmatprep.subr.mxu0 0.0
    %549 = vmatpush1.msra.mxu0 0.0
    %550 = vmatprep.subr.mxu0 0.0
    %551 = vmatpush1.msra.mxu0 0.0
    %552 = vmatprep.subr.mxu0 0.0
    %553 = vmatpush1.msra.mxu0 0.0
    %554 = vmatprep.subr.mxu0 0.0
    %555 = vmatpush1.msra.mxu0 0.0
    %556 = vmatprep.subr.mxu0 0.0
    %557 = vmatpush1.msra.mxu0 0.0
    %558 = vmatprep.subr.mxu0 0.0
    %559 = vmatpush1.msra.mxu0 0.0
    %560 = vmatprep.subr.mxu0 0.0
    %561 = vmatpush1.msra.mxu0 0.0
    %562 = vmatprep.subr.mxu0 0.0
    %563 = vmatpush1.msra.mxu0 0.0
    %564 = vmatprep.subr.mxu0 0.0
    %565 = vmatpush1.msra.mxu0 0.0
    %566 = vmatprep.subr.mxu0 0.0
    %567 = vmatpush1.msra.mxu0 0.0
    %568 = vmatprep.subr.mxu0 0.0
    %569 = vmatpush1.msra.mxu0 0.0
    %570 = vmatprep.subr.mxu0 0.0
    %571 = vmatpush1.msra.mxu0 0.0
    %572 = vmatprep.subr.mxu0 0.0
    %573 = vmatpush1.msra.mxu0 0.0
    %574 = vmatprep.subr.mxu0 0.0
    %575 = vmatpush1.msra.mxu0 0.0
    %576 = vmatprep.subr.mxu0 0.0
    %577 = vmatpush1.msra.mxu0 0.0
    %578 = vmatprep.subr.mxu0 0.0
    %579 = vmatpush1.msra.mxu0 0.0
    %580 = vmatprep.subr.mxu0 0.0
    %581 = vmatpush1.msra.mxu0 0.0
    %582 = vmatprep.subr.mxu0 0.0
    %583 = vmatpush1.msra.mxu0 0.0
    %584 = vmatprep.subr.mxu0 0.0
    %585 = vmatpush1.msra.mxu0 0.0
    %586 = vmatprep.subr.mxu0 0.0
    %587 = vmatpush1.msra.mxu0 0.0
    %588 = vmatprep.subr.mxu0 0.0
    %589 = vmatpush1.msra.mxu0 0.0
    %590 = vmatprep.subr.mxu0 0.0
    %591 = vmatpush1.msra.mxu0 0.0
    %592 = vmatprep.subr.mxu0 0.0
    %593 = vmatpush1.msra.mxu0 0.0
    %594 = vmatprep.subr.mxu0 0.0
    %595 = vmatpush1.msra.mxu0 0.0
    %596 = vmatprep.subr.mxu0 0.0
    %597 = vmatpush1.msra.mxu0 0.0
    %598 = vmatprep.subr.mxu0 0.0
    %599 = vmatpush1.msra.mxu0 0.0
    %600 = vmatprep.mubr.f32.mxu0 0.0
    %v601 = vand.u32 %v521, 4294901760
    %v602 = vsub.f32 %v521, %v601
    %v603 = vand.u32 %v602, 4294901760
    %v604 = vsub.f32 %v602, %v603
    %v605 = vand.u32 %v604, 4294901760
    %606 = vmatmul.mubr.f32.gmra.mrb[0].mxu0 %v605
    %v607 = vpop.f32.mrb[0].mxu0
    %v608 = vadd.f32 %v512, %v607
    %v609 = vpop.f32.mrb[0].mxu0
    %v610 = vadd.f32 %v516, %v609
    %611 = vdwg.mxu0
    %v612 = vand.u32 %v502, 4294901760
    %v613 = vsub.f32 %v502, %v612
    %v614 = vand.u32 %v613, 4294901760
    %v615 = vsub.f32 %v613, %v614
    %v616 = vand.u32 %v615, 4294901760
    %617 = vmatprep.subr.mxu0 %v616
    %v618 = vand.u32 %v501, 4294901760
    %v619 = vsub.f32 %v501, %v618
    %v620 = vand.u32 %v619, 4294901760
    %v621 = vsub.f32 %v619, %v620
    %v622 = vand.u32 %v621, 4294901760
    %623 = vmatpush1.msra.mxu0 %v622
    %v624 = vand.u32 %v504, 4294901760
    %v625 = vsub.f32 %v504, %v624
    %v626 = vand.u32 %v625, 4294901760
    %v627 = vsub.f32 %v625, %v626
    %v628 = vand.u32 %v627, 4294901760
    %629 = vmatprep.subr.mxu0 %v628
    %v630 = vand.u32 %v503, 4294901760
    %v631 = vsub.f32 %v503, %v630
    %v632 = vand.u32 %v631, 4294901760
    %v633 = vsub.f32 %v631, %v632
    %v634 = vand.u32 %v633, 4294901760
    %635 = vmatpush1.msra.mxu0 %v634
    %v636 = vand.u32 %v528, 4294901760
    %v637 = vsub.f32 %v528, %v636
    %v638 = vand.u32 %v637, 4294901760
    %v639 = vsub.f32 %v637, %v638
    %v640 = vand.u32 %v639, 4294901760
    %641 = vmatprep.subr.mxu0 %v640
    %v642 = vand.u32 %v525, 4294901760
    %v643 = vsub.f32 %v525, %v642
    %v644 = vand.u32 %v643, 4294901760
    %v645 = vsub.f32 %v643, %v644
    %v646 = vand.u32 %v645, 4294901760
    %647 = vmatpush1.msra.mxu0 %v646
    %648 = vmatprep.subr.mxu0 0.0
    %649 = vmatpush1.msra.mxu0 0.0
    %650 = vmatprep.subr.mxu0 0.0
    %651 = vmatpush1.msra.mxu0 0.0
    %652 = vmatprep.subr.mxu0 0.0
    %653 = vmatpush1.msra.mxu0 0.0
    %654 = vmatprep.subr.mxu0 0.0
    %655 = vmatpush1.msra.mxu0 0.0
    %656 = vmatprep.subr.mxu0 0.0
    %657 = vmatpush1.msra.mxu0 0.0
    %658 = vmatprep.subr.mxu0 0.0
    %659 = vmatpush1.msra.mxu0 0.0
    %660 = vmatprep.subr.mxu0 0.0
    %661 = vmatpush1.msra.mxu0 0.0
    %662 = vmatprep.subr.mxu0 0.0
    %663 = vmatpush1.msra.mxu0 0.0
    %664 = vmatprep.subr.mxu0 0.0
    %665 = vmatpush1.msra.mxu0 0.0
    %666 = vmatprep.subr.mxu0 0.0
    %667 = vmatpush1.msra.mxu0 0.0
    %668 = vmatprep.subr.mxu0 0.0
    %669 = vmatpush1.msra.mxu0 0.0
    %670 = vmatprep.subr.mxu0 0.0
    %671 = vmatpush1.msra.mxu0 0.0
    %672 = vmatprep.subr.mxu0 0.0
    %673 = vmatpush1.msra.mxu0 0.0
    %674 = vmatprep.subr.mxu0 0.0
    %675 = vmatpush1.msra.mxu0 0.0
    %676 = vmatprep.subr.mxu0 0.0
    %677 = vmatpush1.msra.mxu0 0.0
    %678 = vmatprep.subr.mxu0 0.0
    %679 = vmatpush1.msra.mxu0 0.0
    %680 = vmatprep.subr.mxu0 0.0
    %681 = vmatpush1.msra.mxu0 0.0
    %682 = vmatprep.subr.mxu0 0.0
    %683 = vmatpush1.msra.mxu0 0.0
    %684 = vmatprep.subr.mxu0 0.0
    %685 = vmatpush1.msra.mxu0 0.0
    %686 = vmatprep.subr.mxu0 0.0
    %687 = vmatpush1.msra.mxu0 0.0
    %688 = vmatprep.subr.mxu0 0.0
    %689 = vmatpush1.msra.mxu0 0.0
    %690 = vmatprep.subr.mxu0 0.0
    %691 = vmatpush1.msra.mxu0 0.0
    %692 = vmatprep.subr.mxu0 0.0
    %693 = vmatpush1.msra.mxu0 0.0
    %694 = vmatprep.subr.mxu0 0.0
    %695 = vmatpush1.msra.mxu0 0.0
    %696 = vmatprep.subr.mxu0 0.0
    %697 = vmatpush1.msra.mxu0 0.0
    %698 = vmatprep.subr.mxu0 0.0
    %699 = vmatpush1.msra.mxu0 0.0
    %700 = vmatprep.subr.mxu0 0.0
    %701 = vmatpush1.msra.mxu0 0.0
    %702 = vmatprep.subr.mxu0 0.0
    %703 = vmatpush1.msra.mxu0 0.0
    %704 = vmatprep.subr.mxu0 0.0
    %705 = vmatpush1.msra.mxu0 0.0
    %706 = vmatprep.mubr.f32.mxu0 0.0
    %v707 = vand.u32 %v521, 4294901760
    %708 = vmatmul.mubr.f32.gmra.mrb[0].mxu0 %v707
    %v709 = vpop.f32.mrb[0].mxu0
    %v710 = vadd.f32 %v608, %v709
    %v711 = vpop.f32.mrb[0].mxu0
    %v712 = vadd.f32 %v610, %v711
    %713 = vdwg.mxu0
    %v714 = vand.u32 %v502, 4294901760
    %v715 = vsub.f32 %v502, %v714
    %716 = vmatprep.subr.mxu0 %v715
    %v717 = vand.u32 %v501, 4294901760
    %v718 = vsub.f32 %v501, %v717
    %719 = vmatpush1.msra.mxu0 %v718
    %v720 = vand.u32 %v504, 4294901760
    %v721 = vsub.f32 %v504, %v720
    %722 = vmatprep.subr.mxu0 %v721
    %v723 = vand.u32 %v503, 4294901760
    %v724 = vsub.f32 %v503, %v723
    %725 = vmatpush1.msra.mxu0 %v724
    %v726 = vand.u32 %v528, 4294901760
    %v727 = vsub.f32 %v528, %v726
    %728 = vmatprep.subr.mxu0 %v727
    %v729 = vand.u32 %v525, 4294901760
    %v730 = vsub.f32 %v525, %v729
    %731 = vmatpush1.msra.mxu0 %v730
    %732 = vmatprep.subr.mxu0 0.0
    %733 = vmatpush1.msra.mxu0 0.0
    %734 = vmatprep.subr.mxu0 0.0
    %735 = vmatpush1.msra.mxu0 0.0
    %736 = vmatprep.subr.mxu0 0.0
    %737 = vmatpush1.msra.mxu0 0.0
    %738 = vmatprep.subr.mxu0 0.0
    %739 = vmatpush1.msra.mxu0 0.0
    %740 = vmatprep.subr.mxu0 0.0
    %741 = vmatpush1.msra.mxu0 0.0
    %742 = vmatprep.subr.mxu0 0.0
    %743 = vmatpush1.msra.mxu0 0.0
    %744 = vmatprep.subr.mxu0 0.0
    %745 = vmatpush1.msra.mxu0 0.0
    %746 = vmatprep.subr.mxu0 0.0
    %747 = vmatpush1.msra.mxu0 0.0
    %748 = vmatprep.subr.mxu0 0.0
    %749 = vmatpush1.msra.mxu0 0.0
    %750 = vmatprep.subr.mxu0 0.0
    %751 = vmatpush1.msra.mxu0 0.0
    %752 = vmatprep.subr.mxu0 0.0
    %753 = vmatpush1.msra.mxu0 0.0
    %754 = vmatprep.subr.mxu0 0.0
    %755 = vmatpush1.msra.mxu0 0.0
    %756 = vmatprep.subr.mxu0 0.0
    %757 = vmatpush1.msra.mxu0 0.0
    %758 = vmatprep.subr.mxu0 0.0
    %759 = vmatpush1.msra.mxu0 0.0
    %760 = vmatprep.subr.mxu0 0.0
    %761 = vmatpush1.msra.mxu0 0.0
    %762 = vmatprep.subr.mxu0 0.0
    %763 = vmatpush1.msra.mxu0 0.0
    %764 = vmatprep.subr.mxu0 0.0
    %765 = vmatpush1.msra.mxu0 0.0
    %766 = vmatprep.subr.mxu0 0.0
    %767 = vmatpush1.msra.mxu0 0.0
    %768 = vmatprep.subr.mxu0 0.0
    %769 = vmatpush1.msra.mxu0 0.0
    %770 = vmatprep.subr.mxu0 0.0
    %771 = vmatpush1.msra.mxu0 0.0
    %772 = vmatprep.subr.mxu0 0.0
    %773 = vmatpush1.msra.mxu0 0.0
    %774 = vmatprep.subr.mxu0 0.0
    %775 = vmatpush1.msra.mxu0 0.0
    %776 = vmatprep.subr.mxu0 0.0
    %777 = vmatpush1.msra.mxu0 0.0
    %778 = vmatprep.subr.mxu0 0.0
    %779 = vmatpush1.msra.mxu0 0.0
    %780 = vmatprep.subr.mxu0 0.0
    %781 = vmatpush1.msra.mxu0 0.0
    %782 = vmatprep.subr.mxu0 0.0
    %783 = vmatpush1.msra.mxu0 0.0
    %784 = vmatprep.subr.mxu0 0.0
    %785 = vmatpush1.msra.mxu0 0.0
    %786 = vmatprep.subr.mxu0 0.0
    %787 = vmatpush1.msra.mxu0 0.0
    %788 = vmatprep.subr.mxu0 0.0
    %789 = vmatpush1.msra.mxu0 0.0
    %790 = vmatprep.mubr.f32.mxu0 0.0
    %v791 = vand.u32 %v521, 4294901760
    %v792 = vsub.f32 %v521, %v791
    %793 = vmatmul.mubr.f32.gmra.mrb[0].mxu0 %v792
    %v794 = vpop.f32.mrb[0].mxu0
    %v795 = vadd.f32 %v710, %v794
    %v796 = vpop.f32.mrb[0].mxu0
    %v797 = vadd.f32 %v712, %v796
    %798 = vdwg.mxu0
    %v799 = vand.u32 %v502, 4294901760
    %800 = vmatprep.subr.mxu0 %v799
    %v801 = vand.u32 %v501, 4294901760
    %802 = vmatpush1.msra.mxu0 %v801
    %v803 = vand.u32 %v504, 4294901760
    %804 = vmatprep.subr.mxu0 %v803
    %v805 = vand.u32 %v503, 4294901760
    %806 = vmatpush1.msra.mxu0 %v805
    %v807 = vand.u32 %v528, 4294901760
    %808 = vmatprep.subr.mxu0 %v807
    %v809 = vand.u32 %v525, 4294901760
    %810 = vmatpush1.msra.mxu0 %v809
    %811 = vmatprep.subr.mxu0 0.0
    %812 = vmatpush1.msra.mxu0 0.0
    %813 = vmatprep.subr.mxu0 0.0
    %814 = vmatpush1.msra.mxu0 0.0
    %815 = vmatprep.subr.mxu0 0.0
    %816 = vmatpush1.msra.mxu0 0.0
    %817 = vmatprep.subr.mxu0 0.0
    %818 = vmatpush1.msra.mxu0 0.0
    %819 = vmatprep.subr.mxu0 0.0
    %820 = vmatpush1.msra.mxu0 0.0
    %821 = vmatprep.subr.mxu0 0.0
    %822 = vmatpush1.msra.mxu0 0.0
    %823 = vmatprep.subr.mxu0 0.0
    %824 = vmatpush1.msra.mxu0 0.0
    %825 = vmatprep.subr.mxu0 0.0
    %826 = vmatpush1.msra.mxu0 0.0
    %827 = vmatprep.subr.mxu0 0.0
    %828 = vmatpush1.msra.mxu0 0.0
    %829 = vmatprep.subr.mxu0 0.0
    %830 = vmatpush1.msra.mxu0 0.0
    %831 = vmatprep.subr.mxu0 0.0
    %832 = vmatpush1.msra.mxu0 0.0
    %833 = vmatprep.subr.mxu0 0.0
    %834 = vmatpush1.msra.mxu0 0.0
    %835 = vmatprep.subr.mxu0 0.0
    %836 = vmatpush1.msra.mxu0 0.0
    %837 = vmatprep.subr.mxu0 0.0
    %838 = vmatpush1.msra.mxu0 0.0
    %839 = vmatprep.subr.mxu0 0.0
    %840 = vmatpush1.msra.mxu0 0.0
    %841 = vmatprep.subr.mxu0 0.0
    %842 = vmatpush1.msra.mxu0 0.0
    %843 = vmatprep.subr.mxu0 0.0
    %844 = vmatpush1.msra.mxu0 0.0
    %845 = vmatprep.subr.mxu0 0.0
    %846 = vmatpush1.msra.mxu0 0.0
    %847 = vmatprep.subr.mxu0 0.0
    %848 = vmatpush1.msra.mxu0 0.0
    %849 = vmatprep.subr.mxu0 0.0
    %850 = vmatpush1.msra.mxu0 0.0
    %851 = vmatprep.subr.mxu0 0.0
    %852 = vmatpush1.msra.mxu0 0.0
    %853 = vmatprep.subr.mxu0 0.0
    %854 = vmatpush1.msra.mxu0 0.0
    %855 = vmatprep.subr.mxu0 0.0
    %856 = vmatpush1.msra.mxu0 0.0
    %857 = vmatprep.subr.mxu0 0.0
    %858 = vmatpush1.msra.mxu0 0.0
    %859 = vmatprep.subr.mxu0 0.0
    %860 = vmatpush1.msra.mxu0 0.0
    %861 = vmatprep.subr.mxu0 0.0
    %862 = vmatpush1.msra.mxu0 0.0
    %863 = vmatprep.subr.mxu0 0.0
    %864 = vmatpush1.msra.mxu0 0.0
    %865 = vmatprep.subr.mxu0 0.0
    %866 = vmatpush1.msra.mxu0 0.0
    %867 = vmatprep.subr.mxu0 0.0
    %868 = vmatpush1.msra.mxu0 0.0
    %869 = vmatprep.mubr.f32.mxu0 0.0
    %v870 = vand.u32 %v521, 4294901760
    %v871 = vsub.f32 %v521, %v870
    %v872 = vand.u32 %v871, 4294901760
    %873 = vmatmul.mubr.f32.gmra.mrb[0].mxu0 %v872
    %v874 = vpop.f32.mrb[0].mxu0
    %v875 = vadd.f32 %v795, %v874
    %v876 = vpop.f32.mrb[0].mxu0
    %v877 = vadd.f32 %v797, %v876
    %878 = vdwg.mxu0
    %v879 = vand.u32 %v502, 4294901760
    %v880 = vsub.f32 %v502, %v879
    %v881 = vand.u32 %v880, 4294901760
    %882 = vmatprep.subr.mxu0 %v881
    %v883 = vand.u32 %v501, 4294901760
    %v884 = vsub.f32 %v501, %v883
    %v885 = vand.u32 %v884, 4294901760
    %886 = vmatpush1.msra.mxu0 %v885
    %v887 = vand.u32 %v504, 4294901760
    %v888 = vsub.f32 %v504, %v887
    %v889 = vand.u32 %v888, 4294901760
    %890 = vmatprep.subr.mxu0 %v889
    %v891 = vand.u32 %v503, 4294901760
    %v892 = vsub.f32 %v503, %v891
    %v893 = vand.u32 %v892, 4294901760
    %894 = vmatpush1.msra.mxu0 %v893
    %v895 = vand.u32 %v528, 4294901760
    %v896 = vsub.f32 %v528, %v895
    %v897 = vand.u32 %v896, 4294901760
    %898 = vmatprep.subr.mxu0 %v897
    %v899 = vand.u32 %v525, 4294901760
    %v900 = vsub.f32 %v525, %v899
    %v901 = vand.u32 %v900, 4294901760
    %902 = vmatpush1.msra.mxu0 %v901
    %903 = vmatprep.subr.mxu0 0.0
    %904 = vmatpush1.msra.mxu0 0.0
    %905 = vmatprep.subr.mxu0 0.0
    %906 = vmatpush1.msra.mxu0 0.0
    %907 = vmatprep.subr.mxu0 0.0
    %908 = vmatpush1.msra.mxu0 0.0
    %909 = vmatprep.subr.mxu0 0.0
    %910 = vmatpush1.msra.mxu0 0.0
    %911 = vmatprep.subr.mxu0 0.0
    %912 = vmatpush1.msra.mxu0 0.0
    %913 = vmatprep.subr.mxu0 0.0
    %914 = vmatpush1.msra.mxu0 0.0
    %915 = vmatprep.subr.mxu0 0.0
    %916 = vmatpush1.msra.mxu0 0.0
    %917 = vmatprep.subr.mxu0 0.0
    %918 = vmatpush1.msra.mxu0 0.0
    %919 = vmatprep.subr.mxu0 0.0
    %920 = vmatpush1.msra.mxu0 0.0
    %921 = vmatprep.subr.mxu0 0.0
    %922 = vmatpush1.msra.mxu0 0.0
    %923 = vmatprep.subr.mxu0 0.0
    %924 = vmatpush1.msra.mxu0 0.0
    %925 = vmatprep.subr.mxu0 0.0
    %926 = vmatpush1.msra.mxu0 0.0
    %927 = vmatprep.subr.mxu0 0.0
    %928 = vmatpush1.msra.mxu0 0.0
    %929 = vmatprep.subr.mxu0 0.0
    %930 = vmatpush1.msra.mxu0 0.0
    %931 = vmatprep.subr.mxu0 0.0
    %932 = vmatpush1.msra.mxu0 0.0
    %933 = vmatprep.subr.mxu0 0.0
    %934 = vmatpush1.msra.mxu0 0.0
    %935 = vmatprep.subr.mxu0 0.0
    %936 = vmatpush1.msra.mxu0 0.0
    %937 = vmatprep.subr.mxu0 0.0
    %938 = vmatpush1.msra.mxu0 0.0
    %939 = vmatprep.subr.mxu0 0.0
    %940 = vmatpush1.msra.mxu0 0.0
    %941 = vmatprep.subr.mxu0 0.0
    %942 = vmatpush1.msra.mxu0 0.0
    %943 = vmatprep.subr.mxu0 0.0
    %944 = vmatpush1.msra.mxu0 0.0
    %945 = vmatprep.subr.mxu0 0.0
    %946 = vmatpush1.msra.mxu0 0.0
    %947 = vmatprep.subr.mxu0 0.0
    %948 = vmatpush1.msra.mxu0 0.0
    %949 = vmatprep.subr.mxu0 0.0
    %950 = vmatpush1.msra.mxu0 0.0
    %951 = vmatprep.subr.mxu0 0.0
    %952 = vmatpush1.msra.mxu0 0.0
    %953 = vmatprep.subr.mxu0 0.0
    %954 = vmatpush1.msra.mxu0 0.0
    %955 = vmatprep.subr.mxu0 0.0
    %956 = vmatpush1.msra.mxu0 0.0
    %957 = vmatprep.subr.mxu0 0.0
    %958 = vmatpush1.msra.mxu0 0.0
    %959 = vmatprep.subr.mxu0 0.0
    %960 = vmatpush1.msra.mxu0 0.0
    %961 = vmatprep.mubr.f32.mxu0 0.0
    %v962 = vand.u32 %v521, 4294901760
    %963 = vmatmul.mubr.f32.gmra.mrb[0].mxu0 %v962
    %v964 = vpop.f32.mrb[0].mxu0
    %v965 = vadd.f32 %v875, %v964
    %v966 = vpop.f32.mrb[0].mxu0
    %v967 = vadd.f32 %v877, %v966
    %968 = vdwg.mxu0
    %v969 = vand.u32 %v502, 4294901760
    %970 = vmatprep.subr.mxu0 %v969
    %v971 = vand.u32 %v501, 4294901760
    %972 = vmatpush1.msra.mxu0 %v971
    %v973 = vand.u32 %v504, 4294901760
    %974 = vmatprep.subr.mxu0 %v973
    %v975 = vand.u32 %v503, 4294901760
    %976 = vmatpush1.msra.mxu0 %v975
    %v977 = vand.u32 %v528, 4294901760
    %978 = vmatprep.subr.mxu0 %v977
    %v979 = vand.u32 %v525, 4294901760
    %980 = vmatpush1.msra.mxu0 %v979
    %981 = vmatprep.subr.mxu0 0.0
    %982 = vmatpush1.msra.mxu0 0.0
    %983 = vmatprep.subr.mxu0 0.0
    %984 = vmatpush1.msra.mxu0 0.0
    %985 = vmatprep.subr.mxu0 0.0
    %986 = vmatpush1.msra.mxu0 0.0
    %987 = vmatprep.subr.mxu0 0.0
    %988 = vmatpush1.msra.mxu0 0.0
    %989 = vmatprep.subr.mxu0 0.0
    %990 = vmatpush1.msra.mxu0 0.0
    %991 = vmatprep.subr.mxu0 0.0
    %992 = vmatpush1.msra.mxu0 0.0
    %993 = vmatprep.subr.mxu0 0.0
    %994 = vmatpush1.msra.mxu0 0.0
    %995 = vmatprep.subr.mxu0 0.0
    %996 = vmatpush1.msra.mxu0 0.0
    %997 = vmatprep.subr.mxu0 0.0
    %998 = vmatpush1.msra.mxu0 0.0
    %999 = vmatprep.subr.mxu0 0.0
    %1000 = vmatpush1.msra.mxu0 0.0
    %1001 = vmatprep.subr.mxu0 0.0
    %1002 = vmatpush1.msra.mxu0 0.0
    %1003 = vmatprep.subr.mxu0 0.0
    %1004 = vmatpush1.msra.mxu0 0.0
    %1005 = vmatprep.subr.mxu0 0.0
    %1006 = vmatpush1.msra.mxu0 0.0
    %1007 = vmatprep.subr.mxu0 0.0
    %1008 = vmatpush1.msra.mxu0 0.0
    %1009 = vmatprep.subr.mxu0 0.0
    %1010 = vmatpush1.msra.mxu0 0.0
    %1011 = vmatprep.subr.mxu0 0.0
    %1012 = vmatpush1.msra.mxu0 0.0
    %1013 = vmatprep.subr.mxu0 0.0
    %1014 = vmatpush1.msra.mxu0 0.0
    %1015 = vmatprep.subr.mxu0 0.0
    %1016 = vmatpush1.msra.mxu0 0.0
    %1017 = vmatprep.subr.mxu0 0.0
    %1018 = vmatpush1.msra.mxu0 0.0
    %1019 = vmatprep.subr.mxu0 0.0
    %1020 = vmatpush1.msra.mxu0 0.0
    %1021 = vmatprep.subr.mxu0 0.0
    %1022 = vmatpush1.msra.mxu0 0.0
    %1023 = vmatprep.subr.mxu0 0.0
    %1024 = vmatpush1.msra.mxu0 0.0
    %1025 = vmatprep.subr.mxu0 0.0
    %1026 = vmatpush1.msra.mxu0 0.0
    %1027 = vmatprep.subr.mxu0 0.0
    %1028 = vmatpush1.msra.mxu0 0.0
    %1029 = vmatprep.subr.mxu0 0.0
    %1030 = vmatpush1.msra.mxu0 0.0
    %1031 = vmatprep.subr.mxu0 0.0
    %1032 = vmatpush1.msra.mxu0 0.0
    %1033 = vmatprep.subr.mxu0 0.0
    %1034 = vmatpush1.msra.mxu0 0.0
    %1035 = vmatprep.subr.mxu0 0.0
    %1036 = vmatpush1.msra.mxu0 0.0
    %1037 = vmatprep.subr.mxu0 0.0
    %1038 = vmatpush1.msra.mxu0 0.0
    %1039 = vmatprep.mubr.f32.mxu0 0.0
    %v1040 = vand.u32 %v521, 4294901760
    %1041 = vmatmul.mubr.f32.gmra.mrb[0].mxu0 %v1040
    %v1042 = vpop.f32.mrb[0].mxu0
    %v1043 = vadd.f32 %v965, %v1042
    %v1044 = vpop.f32.mrb[0].mxu0
    %v1045 = vadd.f32 %v967, %v1044
    %1046 = vdwg.mxu0
    %v1047 = vmax.f32 %v1043, 0.0
    %v1048 = vmax.f32 %v1045, 0.0
    %v1049 = vld [vmem:[%s5] sm:$0xff]
    %v1050 = vld [vmem:[%s5 + $0x8] sm:$0xff]
    %v1051 = vld [vmem:[%s5 + $0x10] sm:$0xff]
    %v1052 = vld [vmem:[%s5 + $0x18] sm:$0xff]
    %v1053 = vld [vmem:[%s5 + $0x20] sm:$0xff]
    %v1054 = vld [vmem:[%s5 + $0x28] sm:$0xff]
    %v1055 = vld [vmem:[%s5 + $0x30] sm:$0xff]
    %v1056 = vld [vmem:[%s5 + $0x38] sm:$0xff]
    %v1057 = vld [vmem:[%s5 + $0x40] sm:$0xff]
    %v1058 = vld [vmem:[%s5 + $0x48] sm:$0xff]
    %v1059 = vld [vmem:[%s5 + $0x50] sm:$0xff]
    %v1060 = vld [vmem:[%s5 + $0x58] sm:$0xff]
    %v1061 = vld [vmem:[%s5 + $0x60] sm:$0xff]
    %v1062 = vld [vmem:[%s5 + $0x68] sm:$0xff]
    %v1063 = vld [vmem:[%s5 + $0x70] sm:$0xff]
    %v1064 = vld [vmem:[%s5 + $0x78] sm:$0xff]
    %v1065 = vld [vmem:[%s5 + $0x80] sm:$0xff]
    %v1066 = vld [vmem:[%s5 + $0x88] sm:$0xff]
    %v1067 = vld [vmem:[%s5 + $0x90] sm:$0xff]
    %v1068 = vld [vmem:[%s5 + $0x98] sm:$0xff]
    %v1069 = vld [vmem:[%s5 + $0xa0] sm:$0xff]
    %v1070 = vld [vmem:[%s5 + $0xa8] sm:$0xff]
    %v1071 = vld [vmem:[%s5 + $0xb0] sm:$0xff]
    %v1072 = vld [vmem:[%s5 + $0xb8] sm:$0xff]
    %v1073 = vld [vmem:[%s5 + $0xc0] sm:$0xff]
    %v1074 = vld [vmem:[%s5 + $0xc8] sm:$0xff]
    %v1075 = vld [vmem:[%s5 + $0xd0] sm:$0xff]
    %v1076 = vld [vmem:[%s5 + $0xd8] sm:$0xff]
    %v1077 = vld [vmem:[%s5 + $0xe0] sm:$0xff]
    %v1078 = vld [vmem:[%s5 + $0xe8] sm:$0xff]
    %v1079 = vld [vmem:[%s6] sm:$0x1]
    %v1081 = vlaneseq
    %v1082 = vshrl.u32 %v1081, 7
    %v1083 = vsub.s32 0, %v1082
    %v1084 = vrot.slane %v1079, %v1083
    %vm1086 = vcmask 916480
    %v1088 = vsel %vm1086, %v1048, 0
    %1090 = vmatprep.subr.mxu0 0.0
    %v1091 = vand.u32 %v1049, 4294901760
    %1092 = vmatpush1.msra.mxu0 %v1091
    %1093 = vmatprep.subr.mxu0 0.0
    %v1094 = vand.u32 %v1050, 4294901760
    %1095 = vmatpush1.msra.mxu0 %v1094
    %1096 = vmatprep.subr.mxu0 0.0
    %v1097 = vand.u32 %v1051, 4294901760
    %1098 = vmatpush1.msra.mxu0 %v1097
    %1099 = vmatprep.subr.mxu0 0.0
    %v1100 = vand.u32 %v1052, 4294901760
    %1101 = vmatpush1.msra.mxu0 %v1100
    %1102 = vmatprep.subr.mxu0 0.0
    %v1103 = vand.u32 %v1053, 4294901760
    %1104 = vmatpush1.msra.mxu0 %v1103
    %1105 = vmatprep.subr.mxu0 0.0
    %v1106 = vand.u32 %v1054, 4294901760
    %1107 = vmatpush1.msra.mxu0 %v1106
    %1108 = vmatprep.subr.mxu0 0.0
    %v1109 = vand.u32 %v1055, 4294901760
    %1110 = vmatpush1.msra.mxu0 %v1109
    %1111 = vmatprep.subr.mxu0 0.0
    %v1112 = vand.u32 %v1056, 4294901760
    %1113 = vmatpush1.msra.mxu0 %v1112
    %1114 = vmatprep.subr.mxu0 0.0
    %v1115 = vand.u32 %v1057, 4294901760
    %1116 = vmatpush1.msra.mxu0 %v1115
    %1117 = vmatprep.subr.mxu0 0.0
    %v1118 = vand.u32 %v1058, 4294901760
    %1119 = vmatpush1.msra.mxu0 %v1118
    %1120 = vmatprep.subr.mxu0 0.0
    %v1121 = vand.u32 %v1059, 4294901760
    %1122 = vmatpush1.msra.mxu0 %v1121
    %1123 = vmatprep.subr.mxu0 0.0
    %v1124 = vand.u32 %v1060, 4294901760
    %1125 = vmatpush1.msra.mxu0 %v1124
    %1126 = vmatprep.subr.mxu0 0.0
    %v1127 = vand.u32 %v1061, 4294901760
    %1128 = vmatpush1.msra.mxu0 %v1127
    %1129 = vmatprep.subr.mxu0 0.0
    %v1130 = vand.u32 %v1062, 4294901760
    %1131 = vmatpush1.msra.mxu0 %v1130
    %1132 = vmatprep.subr.mxu0 0.0
    %v1133 = vand.u32 %v1063, 4294901760
    %1134 = vmatpush1.msra.mxu0 %v1133
    %1135 = vmatprep.subr.mxu0 0.0
    %v1136 = vand.u32 %v1064, 4294901760
    %1137 = vmatpush1.msra.mxu0 %v1136
    %1138 = vmatprep.subr.mxu0 0.0
    %v1139 = vand.u32 %v1065, 4294901760
    %1140 = vmatpush1.msra.mxu0 %v1139
    %1141 = vmatprep.subr.mxu0 0.0
    %v1142 = vand.u32 %v1066, 4294901760
    %1143 = vmatpush1.msra.mxu0 %v1142
    %1144 = vmatprep.subr.mxu0 0.0
    %v1145 = vand.u32 %v1067, 4294901760
    %1146 = vmatpush1.msra.mxu0 %v1145
    %1147 = vmatprep.subr.mxu0 0.0
    %v1148 = vand.u32 %v1068, 4294901760
    %1149 = vmatpush1.msra.mxu0 %v1148
    %1150 = vmatprep.subr.mxu0 0.0
    %v1151 = vand.u32 %v1069, 4294901760
    %1152 = vmatpush1.msra.mxu0 %v1151
    %1153 = vmatprep.subr.mxu0 0.0
    %v1154 = vand.u32 %v1070, 4294901760
    %1155 = vmatpush1.msra.mxu0 %v1154
    %1156 = vmatprep.subr.mxu0 0.0
    %v1157 = vand.u32 %v1071, 4294901760
    %1158 = vmatpush1.msra.mxu0 %v1157
    %1159 = vmatprep.subr.mxu0 0.0
    %v1160 = vand.u32 %v1072, 4294901760
    %1161 = vmatpush1.msra.mxu0 %v1160
    %1162 = vmatprep.subr.mxu0 0.0
    %v1163 = vand.u32 %v1073, 4294901760
    %1164 = vmatpush1.msra.mxu0 %v1163
    %1165 = vmatprep.subr.mxu0 0.0
    %v1166 = vand.u32 %v1074, 4294901760
    %1167 = vmatpush1.msra.mxu0 %v1166
    %1168 = vmatprep.subr.mxu0 0.0
    %v1169 = vand.u32 %v1075, 4294901760
    %1170 = vmatpush1.msra.mxu0 %v1169
    %1171 = vmatprep.subr.mxu0 0.0
    %v1172 = vand.u32 %v1076, 4294901760
    %1173 = vmatpush1.msra.mxu0 %v1172
    %1174 = vmatprep.subr.mxu0 0.0
    %v1175 = vand.u32 %v1077, 4294901760
    %1176 = vmatpush1.msra.mxu0 %v1175
    %1177 = vmatprep.subr.mxu0 0.0
    %v1178 = vand.u32 %v1078, 4294901760
    %1179 = vmatpush1.msra.mxu0 %v1178
    %1180 = vmatprep.subr.mxu0 0.0
    %1181 = vmatpush1.msra.mxu0 0.0
    %1182 = vmatprep.subr.mxu0 0.0
    %1183 = vmatpush1.msra.mxu0 0.0
    %v1184 = vand.u32 %v1088, 4294901760
    %v1185 = vsub.f32 %v1088, %v1184
    %v1186 = vand.u32 %v1185, 4294901760
    %v1187 = vsub.f32 %v1185, %v1186
    %v1188 = vand.u32 %v1187, 4294901760
    %1189 = vmatprep.mubr.f32.mxu0 %v1188
    %v1190 = vand.u32 %v1047, 4294901760
    %v1191 = vsub.f32 %v1047, %v1190
    %v1192 = vand.u32 %v1191, 4294901760
    %v1193 = vsub.f32 %v1191, %v1192
    %v1194 = vand.u32 %v1193, 4294901760
    %1195 = vmatmul.mubr.f32.gmra.mrb[0].mxu0 %v1194
    %v1196 = vpop.f32.mrb[0].mxu0
    %v1197 = vadd.f32 %v1084, %v1196
    %v1198 = vpop.f32.mrb[0].mxu0
    %1199 = vdwg.mxu0
    %1200 = vmatprep.subr.mxu0 0.0
    %v1201 = vand.u32 %v1049, 4294901760
    %v1202 = vsub.f32 %v1049, %v1201
    %v1203 = vand.u32 %v1202, 4294901760
    %v1204 = vsub.f32 %v1202, %v1203
    %v1205 = vand.u32 %v1204, 4294901760
    %1206 = vmatpush1.msra.mxu0 %v1205
    %1207 = vmatprep.subr.mxu0 0.0
    %v1208 = vand.u32 %v1050, 4294901760
    %v1209 = vsub.f32 %v1050, %v1208
    %v1210 = vand.u32 %v1209, 4294901760
    %v1211 = vsub.f32 %v1209, %v1210
    %v1212 = vand.u32 %v1211, 4294901760
    %1213 = vmatpush1.msra.mxu0 %v1212
    %1214 = vmatprep.subr.mxu0 0.0
    %v1215 = vand.u32 %v1051, 4294901760
    %v1216 = vsub.f32 %v1051, %v1215
    %v1217 = vand.u32 %v1216, 4294901760
    %v1218 = vsub.f32 %v1216, %v1217
    %v1219 = vand.u32 %v1218, 4294901760
    %1220 = vmatpush1.msra.mxu0 %v1219
    %1221 = vmatprep.subr.mxu0 0.0
    %v1222 = vand.u32 %v1052, 4294901760
    %v1223 = vsub.f32 %v1052, %v1222
    %v1224 = vand.u32 %v1223, 4294901760
    %v1225 = vsub.f32 %v1223, %v1224
    %v1226 = vand.u32 %v1225, 4294901760
    %1227 = vmatpush1.msra.mxu0 %v1226
    %1228 = vmatprep.subr.mxu0 0.0
    %v1229 = vand.u32 %v1053, 4294901760
    %v1230 = vsub.f32 %v1053, %v1229
    %v1231 = vand.u32 %v1230, 4294901760
    %v1232 = vsub.f32 %v1230, %v1231
    %v1233 = vand.u32 %v1232, 4294901760
    %1234 = vmatpush1.msra.mxu0 %v1233
    %1235 = vmatprep.subr.mxu0 0.0
    %v1236 = vand.u32 %v1054, 4294901760
    %v1237 = vsub.f32 %v1054, %v1236
    %v1238 = vand.u32 %v1237, 4294901760
    %v1239 = vsub.f32 %v1237, %v1238
    %v1240 = vand.u32 %v1239, 4294901760
    %1241 = vmatpush1.msra.mxu0 %v1240
    %1242 = vmatprep.subr.mxu0 0.0
    %v1243 = vand.u32 %v1055, 4294901760
    %v1244 = vsub.f32 %v1055, %v1243
    %v1245 = vand.u32 %v1244, 4294901760
    %v1246 = vsub.f32 %v1244, %v1245
    %v1247 = vand.u32 %v1246, 4294901760
    %1248 = vmatpush1.msra.mxu0 %v1247
    %1249 = vmatprep.subr.mxu0 0.0
    %v1250 = vand.u32 %v1056, 4294901760
    %v1251 = vsub.f32 %v1056, %v1250
    %v1252 = vand.u32 %v1251, 4294901760
    %v1253 = vsub.f32 %v1251, %v1252
    %v1254 = vand.u32 %v1253, 4294901760
    %1255 = vmatpush1.msra.mxu0 %v1254
    %1256 = vmatprep.subr.mxu0 0.0
    %v1257 = vand.u32 %v1057, 4294901760
    %v1258 = vsub.f32 %v1057, %v1257
    %v1259 = vand.u32 %v1258, 4294901760
    %v1260 = vsub.f32 %v1258, %v1259
    %v1261 = vand.u32 %v1260, 4294901760
    %1262 = vmatpush1.msra.mxu0 %v1261
    %1263 = vmatprep.subr.mxu0 0.0
    %v1264 = vand.u32 %v1058, 4294901760
    %v1265 = vsub.f32 %v1058, %v1264
    %v1266 = vand.u32 %v1265, 4294901760
    %v1267 = vsub.f32 %v1265, %v1266
    %v1268 = vand.u32 %v1267, 4294901760
    %1269 = vmatpush1.msra.mxu0 %v1268
    %1270 = vmatprep.subr.mxu0 0.0
    %v1271 = vand.u32 %v1059, 4294901760
    %v1272 = vsub.f32 %v1059, %v1271
    %v1273 = vand.u32 %v1272, 4294901760
    %v1274 = vsub.f32 %v1272, %v1273
    %v1275 = vand.u32 %v1274, 4294901760
    %1276 = vmatpush1.msra.mxu0 %v1275
    %1277 = vmatprep.subr.mxu0 0.0
    %v1278 = vand.u32 %v1060, 4294901760
    %v1279 = vsub.f32 %v1060, %v1278
    %v1280 = vand.u32 %v1279, 4294901760
    %v1281 = vsub.f32 %v1279, %v1280
    %v1282 = vand.u32 %v1281, 4294901760
    %1283 = vmatpush1.msra.mxu0 %v1282
    %1284 = vmatprep.subr.mxu0 0.0
    %v1285 = vand.u32 %v1061, 4294901760
    %v1286 = vsub.f32 %v1061, %v1285
    %v1287 = vand.u32 %v1286, 4294901760
    %v1288 = vsub.f32 %v1286, %v1287
    %v1289 = vand.u32 %v1288, 4294901760
    %1290 = vmatpush1.msra.mxu0 %v1289
    %1291 = vmatprep.subr.mxu0 0.0
    %v1292 = vand.u32 %v1062, 4294901760
    %v1293 = vsub.f32 %v1062, %v1292
    %v1294 = vand.u32 %v1293, 4294901760
    %v1295 = vsub.f32 %v1293, %v1294
    %v1296 = vand.u32 %v1295, 4294901760
    %1297 = vmatpush1.msra.mxu0 %v1296
    %1298 = vmatprep.subr.mxu0 0.0
    %v1299 = vand.u32 %v1063, 4294901760
    %v1300 = vsub.f32 %v1063, %v1299
    %v1301 = vand.u32 %v1300, 4294901760
    %v1302 = vsub.f32 %v1300, %v1301
    %v1303 = vand.u32 %v1302, 4294901760
    %1304 = vmatpush1.msra.mxu0 %v1303
    %1305 = vmatprep.subr.mxu0 0.0
    %v1306 = vand.u32 %v1064, 4294901760
    %v1307 = vsub.f32 %v1064, %v1306
    %v1308 = vand.u32 %v1307, 4294901760
    %v1309 = vsub.f32 %v1307, %v1308
    %v1310 = vand.u32 %v1309, 4294901760
    %1311 = vmatpush1.msra.mxu0 %v1310
    %1312 = vmatprep.subr.mxu0 0.0
    %v1313 = vand.u32 %v1065, 4294901760
    %v1314 = vsub.f32 %v1065, %v1313
    %v1315 = vand.u32 %v1314, 4294901760
    %v1316 = vsub.f32 %v1314, %v1315
    %v1317 = vand.u32 %v1316, 4294901760
    %1318 = vmatpush1.msra.mxu0 %v1317
    %1319 = vmatprep.subr.mxu0 0.0
    %v1320 = vand.u32 %v1066, 4294901760
    %v1321 = vsub.f32 %v1066, %v1320
    %v1322 = vand.u32 %v1321, 4294901760
    %v1323 = vsub.f32 %v1321, %v1322
    %v1324 = vand.u32 %v1323, 4294901760
    %1325 = vmatpush1.msra.mxu0 %v1324
    %1326 = vmatprep.subr.mxu0 0.0
    %v1327 = vand.u32 %v1067, 4294901760
    %v1328 = vsub.f32 %v1067, %v1327
    %v1329 = vand.u32 %v1328, 4294901760
    %v1330 = vsub.f32 %v1328, %v1329
    %v1331 = vand.u32 %v1330, 4294901760
    %1332 = vmatpush1.msra.mxu0 %v1331
    %1333 = vmatprep.subr.mxu0 0.0
    %v1334 = vand.u32 %v1068, 4294901760
    %v1335 = vsub.f32 %v1068, %v1334
    %v1336 = vand.u32 %v1335, 4294901760
    %v1337 = vsub.f32 %v1335, %v1336
    %v1338 = vand.u32 %v1337, 4294901760
    %1339 = vmatpush1.msra.mxu0 %v1338
    %1340 = vmatprep.subr.mxu0 0.0
    %v1341 = vand.u32 %v1069, 4294901760
    %v1342 = vsub.f32 %v1069, %v1341
    %v1343 = vand.u32 %v1342, 4294901760
    %v1344 = vsub.f32 %v1342, %v1343
    %v1345 = vand.u32 %v1344, 4294901760
    %1346 = vmatpush1.msra.mxu0 %v1345
    %1347 = vmatprep.subr.mxu0 0.0
    %v1348 = vand.u32 %v1070, 4294901760
    %v1349 = vsub.f32 %v1070, %v1348
    %v1350 = vand.u32 %v1349, 4294901760
    %v1351 = vsub.f32 %v1349, %v1350
    %v1352 = vand.u32 %v1351, 4294901760
    %1353 = vmatpush1.msra.mxu0 %v1352
    %1354 = vmatprep.subr.mxu0 0.0
    %v1355 = vand.u32 %v1071, 4294901760
    %v1356 = vsub.f32 %v1071, %v1355
    %v1357 = vand.u32 %v1356, 4294901760
    %v1358 = vsub.f32 %v1356, %v1357
    %v1359 = vand.u32 %v1358, 4294901760
    %1360 = vmatpush1.msra.mxu0 %v1359
    %1361 = vmatprep.subr.mxu0 0.0
    %v1362 = vand.u32 %v1072, 4294901760
    %v1363 = vsub.f32 %v1072, %v1362
    %v1364 = vand.u32 %v1363, 4294901760
    %v1365 = vsub.f32 %v1363, %v1364
    %v1366 = vand.u32 %v1365, 4294901760
    %1367 = vmatpush1.msra.mxu0 %v1366
    %1368 = vmatprep.subr.mxu0 0.0
    %v1369 = vand.u32 %v1073, 4294901760
    %v1370 = vsub.f32 %v1073, %v1369
    %v1371 = vand.u32 %v1370, 4294901760
    %v1372 = vsub.f32 %v1370, %v1371
    %v1373 = vand.u32 %v1372, 4294901760
    %1374 = vmatpush1.msra.mxu0 %v1373
    %1375 = vmatprep.subr.mxu0 0.0
    %v1376 = vand.u32 %v1074, 4294901760
    %v1377 = vsub.f32 %v1074, %v1376
    %v1378 = vand.u32 %v1377, 4294901760
    %v1379 = vsub.f32 %v1377, %v1378
    %v1380 = vand.u32 %v1379, 4294901760
    %1381 = vmatpush1.msra.mxu0 %v1380
    %1382 = vmatprep.subr.mxu0 0.0
    %v1383 = vand.u32 %v1075, 4294901760
    %v1384 = vsub.f32 %v1075, %v1383
    %v1385 = vand.u32 %v1384, 4294901760
    %v1386 = vsub.f32 %v1384, %v1385
    %v1387 = vand.u32 %v1386, 4294901760
    %1388 = vmatpush1.msra.mxu0 %v1387
    %1389 = vmatprep.subr.mxu0 0.0
    %v1390 = vand.u32 %v1076, 4294901760
    %v1391 = vsub.f32 %v1076, %v1390
    %v1392 = vand.u32 %v1391, 4294901760
    %v1393 = vsub.f32 %v1391, %v1392
    %v1394 = vand.u32 %v1393, 4294901760
    %1395 = vmatpush1.msra.mxu0 %v1394
    %1396 = vmatprep.subr.mxu0 0.0
    %v1397 = vand.u32 %v1077, 4294901760
    %v1398 = vsub.f32 %v1077, %v1397
    %v1399 = vand.u32 %v1398, 4294901760
    %v1400 = vsub.f32 %v1398, %v1399
    %v1401 = vand.u32 %v1400, 4294901760
    %1402 = vmatpush1.msra.mxu0 %v1401
    %1403 = vmatprep.subr.mxu0 0.0
    %v1404 = vand.u32 %v1078, 4294901760
    %v1405 = vsub.f32 %v1078, %v1404
    %v1406 = vand.u32 %v1405, 4294901760
    %v1407 = vsub.f32 %v1405, %v1406
    %v1408 = vand.u32 %v1407, 4294901760
    %1409 = vmatpush1.msra.mxu0 %v1408
    %1410 = vmatprep.subr.mxu0 0.0
    %1411 = vmatpush1.msra.mxu0 0.0
    %1412 = vmatprep.subr.mxu0 0.0
    %1413 = vmatpush1.msra.mxu0 0.0
    %v1414 = vand.u32 %v1088, 4294901760
    %1415 = vmatprep.mubr.f32.mxu0 %v1414
    %v1416 = vand.u32 %v1047, 4294901760
    %1417 = vmatmul.mubr.f32.gmra.mrb[0].mxu0 %v1416
    %v1418 = vpop.f32.mrb[0].mxu0
    %v1419 = vadd.f32 %v1197, %v1418
    %v1420 = vpop.f32.mrb[0].mxu0
    %1421 = vdwg.mxu0
    %1422 = vmatprep.subr.mxu0 0.0
    %v1423 = vand.u32 %v1049, 4294901760
    %v1424 = vsub.f32 %v1049, %v1423
    %1425 = vmatpush1.msra.mxu0 %v1424
    %1426 = vmatprep.subr.mxu0 0.0
    %v1427 = vand.u32 %v1050, 4294901760
    %v1428 = vsub.f32 %v1050, %v1427
    %1429 = vmatpush1.msra.mxu0 %v1428
    %1430 = vmatprep.subr.mxu0 0.0
    %v1431 = vand.u32 %v1051, 4294901760
    %v1432 = vsub.f32 %v1051, %v1431
    %1433 = vmatpush1.msra.mxu0 %v1432
    %1434 = vmatprep.subr.mxu0 0.0
    %v1435 = vand.u32 %v1052, 4294901760
    %v1436 = vsub.f32 %v1052, %v1435
    %1437 = vmatpush1.msra.mxu0 %v1436
    %1438 = vmatprep.subr.mxu0 0.0
    %v1439 = vand.u32 %v1053, 4294901760
    %v1440 = vsub.f32 %v1053, %v1439
    %1441 = vmatpush1.msra.mxu0 %v1440
    %1442 = vmatprep.subr.mxu0 0.0
    %v1443 = vand.u32 %v1054, 4294901760
    %v1444 = vsub.f32 %v1054, %v1443
    %1445 = vmatpush1.msra.mxu0 %v1444
    %1446 = vmatprep.subr.mxu0 0.0
    %v1447 = vand.u32 %v1055, 4294901760
    %v1448 = vsub.f32 %v1055, %v1447
    %1449 = vmatpush1.msra.mxu0 %v1448
    %1450 = vmatprep.subr.mxu0 0.0
    %v1451 = vand.u32 %v1056, 4294901760
    %v1452 = vsub.f32 %v1056, %v1451
    %1453 = vmatpush1.msra.mxu0 %v1452
    %1454 = vmatprep.subr.mxu0 0.0
    %v1455 = vand.u32 %v1057, 4294901760
    %v1456 = vsub.f32 %v1057, %v1455
    %1457 = vmatpush1.msra.mxu0 %v1456
    %1458 = vmatprep.subr.mxu0 0.0
    %v1459 = vand.u32 %v1058, 4294901760
    %v1460 = vsub.f32 %v1058, %v1459
    %1461 = vmatpush1.msra.mxu0 %v1460
    %1462 = vmatprep.subr.mxu0 0.0
    %v1463 = vand.u32 %v1059, 4294901760
    %v1464 = vsub.f32 %v1059, %v1463
    %1465 = vmatpush1.msra.mxu0 %v1464
    %1466 = vmatprep.subr.mxu0 0.0
    %v1467 = vand.u32 %v1060, 4294901760
    %v1468 = vsub.f32 %v1060, %v1467
    %1469 = vmatpush1.msra.mxu0 %v1468
    %1470 = vmatprep.subr.mxu0 0.0
    %v1471 = vand.u32 %v1061, 4294901760
    %v1472 = vsub.f32 %v1061, %v1471
    %1473 = vmatpush1.msra.mxu0 %v1472
    %1474 = vmatprep.subr.mxu0 0.0
    %v1475 = vand.u32 %v1062, 4294901760
    %v1476 = vsub.f32 %v1062, %v1475
    %1477 = vmatpush1.msra.mxu0 %v1476
    %1478 = vmatprep.subr.mxu0 0.0
    %v1479 = vand.u32 %v1063, 4294901760
    %v1480 = vsub.f32 %v1063, %v1479
    %1481 = vmatpush1.msra.mxu0 %v1480
    %1482 = vmatprep.subr.mxu0 0.0
    %v1483 = vand.u32 %v1064, 4294901760
    %v1484 = vsub.f32 %v1064, %v1483
    %1485 = vmatpush1.msra.mxu0 %v1484
    %1486 = vmatprep.subr.mxu0 0.0
    %v1487 = vand.u32 %v1065, 4294901760
    %v1488 = vsub.f32 %v1065, %v1487
    %1489 = vmatpush1.msra.mxu0 %v1488
    %1490 = vmatprep.subr.mxu0 0.0
    %v1491 = vand.u32 %v1066, 4294901760
    %v1492 = vsub.f32 %v1066, %v1491
    %1493 = vmatpush1.msra.mxu0 %v1492
    %1494 = vmatprep.subr.mxu0 0.0
    %v1495 = vand.u32 %v1067, 4294901760
    %v1496 = vsub.f32 %v1067, %v1495
    %1497 = vmatpush1.msra.mxu0 %v1496
    %1498 = vmatprep.subr.mxu0 0.0
    %v1499 = vand.u32 %v1068, 4294901760
    %v1500 = vsub.f32 %v1068, %v1499
    %1501 = vmatpush1.msra.mxu0 %v1500
    %1502 = vmatprep.subr.mxu0 0.0
    %v1503 = vand.u32 %v1069, 4294901760
    %v1504 = vsub.f32 %v1069, %v1503
    %1505 = vmatpush1.msra.mxu0 %v1504
    %1506 = vmatprep.subr.mxu0 0.0
    %v1507 = vand.u32 %v1070, 4294901760
    %v1508 = vsub.f32 %v1070, %v1507
    %1509 = vmatpush1.msra.mxu0 %v1508
    %1510 = vmatprep.subr.mxu0 0.0
    %v1511 = vand.u32 %v1071, 4294901760
    %v1512 = vsub.f32 %v1071, %v1511
    %1513 = vmatpush1.msra.mxu0 %v1512
    %1514 = vmatprep.subr.mxu0 0.0
    %v1515 = vand.u32 %v1072, 4294901760
    %v1516 = vsub.f32 %v1072, %v1515
    %1517 = vmatpush1.msra.mxu0 %v1516
    %1518 = vmatprep.subr.mxu0 0.0
    %v1519 = vand.u32 %v1073, 4294901760
    %v1520 = vsub.f32 %v1073, %v1519
    %1521 = vmatpush1.msra.mxu0 %v1520
    %1522 = vmatprep.subr.mxu0 0.0
    %v1523 = vand.u32 %v1074, 4294901760
    %v1524 = vsub.f32 %v1074, %v1523
    %1525 = vmatpush1.msra.mxu0 %v1524
    %1526 = vmatprep.subr.mxu0 0.0
    %v1527 = vand.u32 %v1075, 4294901760
    %v1528 = vsub.f32 %v1075, %v1527
    %1529 = vmatpush1.msra.mxu0 %v1528
    %1530 = vmatprep.subr.mxu0 0.0
    %v1531 = vand.u32 %v1076, 4294901760
    %v1532 = vsub.f32 %v1076, %v1531
    %1533 = vmatpush1.msra.mxu0 %v1532
    %1534 = vmatprep.subr.mxu0 0.0
    %v1535 = vand.u32 %v1077, 4294901760
    %v1536 = vsub.f32 %v1077, %v1535
    %1537 = vmatpush1.msra.mxu0 %v1536
    %1538 = vmatprep.subr.mxu0 0.0
    %v1539 = vand.u32 %v1078, 4294901760
    %v1540 = vsub.f32 %v1078, %v1539
    %1541 = vmatpush1.msra.mxu0 %v1540
    %1542 = vmatprep.subr.mxu0 0.0
    %1543 = vmatpush1.msra.mxu0 0.0
    %1544 = vmatprep.subr.mxu0 0.0
    %1545 = vmatpush1.msra.mxu0 0.0
    %v1546 = vand.u32 %v1088, 4294901760
    %v1547 = vsub.f32 %v1088, %v1546
    %1548 = vmatprep.mubr.f32.mxu0 %v1547
    %v1549 = vand.u32 %v1047, 4294901760
    %v1550 = vsub.f32 %v1047, %v1549
    %1551 = vmatmul.mubr.f32.gmra.mrb[0].mxu0 %v1550
    %v1552 = vpop.f32.mrb[0].mxu0
    %v1553 = vadd.f32 %v1419, %v1552
    %v1554 = vpop.f32.mrb[0].mxu0
    %1555 = vdwg.mxu0
    %1556 = vmatprep.subr.mxu0 0.0
    %v1557 = vand.u32 %v1049, 4294901760
    %1558 = vmatpush1.msra.mxu0 %v1557
    %1559 = vmatprep.subr.mxu0 0.0
    %v1560 = vand.u32 %v1050, 4294901760
    %1561 = vmatpush1.msra.mxu0 %v1560
    %1562 = vmatprep.subr.mxu0 0.0
    %v1563 = vand.u32 %v1051, 4294901760
    %1564 = vmatpush1.msra.mxu0 %v1563
    %1565 = vmatprep.subr.mxu0 0.0
    %v1566 = vand.u32 %v1052, 4294901760
    %1567 = vmatpush1.msra.mxu0 %v1566
    %1568 = vmatprep.subr.mxu0 0.0
    %v1569 = vand.u32 %v1053, 4294901760
    %1570 = vmatpush1.msra.mxu0 %v1569
    %1571 = vmatprep.subr.mxu0 0.0
    %v1572 = vand.u32 %v1054, 4294901760
    %1573 = vmatpush1.msra.mxu0 %v1572
    %1574 = vmatprep.subr.mxu0 0.0
    %v1575 = vand.u32 %v1055, 4294901760
    %1576 = vmatpush1.msra.mxu0 %v1575
    %1577 = vmatprep.subr.mxu0 0.0
    %v1578 = vand.u32 %v1056, 4294901760
    %1579 = vmatpush1.msra.mxu0 %v1578
    %1580 = vmatprep.subr.mxu0 0.0
    %v1581 = vand.u32 %v1057, 4294901760
    %1582 = vmatpush1.msra.mxu0 %v1581
    %1583 = vmatprep.subr.mxu0 0.0
    %v1584 = vand.u32 %v1058, 4294901760
    %1585 = vmatpush1.msra.mxu0 %v1584
    %1586 = vmatprep.subr.mxu0 0.0
    %v1587 = vand.u32 %v1059, 4294901760
    %1588 = vmatpush1.msra.mxu0 %v1587
    %1589 = vmatprep.subr.mxu0 0.0
    %v1590 = vand.u32 %v1060, 4294901760
    %1591 = vmatpush1.msra.mxu0 %v1590
    %1592 = vmatprep.subr.mxu0 0.0
    %v1593 = vand.u32 %v1061, 4294901760
    %1594 = vmatpush1.msra.mxu0 %v1593
    %1595 = vmatprep.subr.mxu0 0.0
    %v1596 = vand.u32 %v1062, 4294901760
    %1597 = vmatpush1.msra.mxu0 %v1596
    %1598 = vmatprep.subr.mxu0 0.0
    %v1599 = vand.u32 %v1063, 4294901760
    %1600 = vmatpush1.msra.mxu0 %v1599
    %1601 = vmatprep.subr.mxu0 0.0
    %v1602 = vand.u32 %v1064, 4294901760
    %1603 = vmatpush1.msra.mxu0 %v1602
    %1604 = vmatprep.subr.mxu0 0.0
    %v1605 = vand.u32 %v1065, 4294901760
    %1606 = vmatpush1.msra.mxu0 %v1605
    %1607 = vmatprep.subr.mxu0 0.0
    %v1608 = vand.u32 %v1066, 4294901760
    %1609 = vmatpush1.msra.mxu0 %v1608
    %1610 = vmatprep.subr.mxu0 0.0
    %v1611 = vand.u32 %v1067, 4294901760
    %1612 = vmatpush1.msra.mxu0 %v1611
    %1613 = vmatprep.subr.mxu0 0.0
    %v1614 = vand.u32 %v1068, 4294901760
    %1615 = vmatpush1.msra.mxu0 %v1614
    %1616 = vmatprep.subr.mxu0 0.0
    %v1617 = vand.u32 %v1069, 4294901760
    %1618 = vmatpush1.msra.mxu0 %v1617
    %1619 = vmatprep.subr.mxu0 0.0
    %v1620 = vand.u32 %v1070, 4294901760
    %1621 = vmatpush1.msra.mxu0 %v1620
    %1622 = vmatprep.subr.mxu0 0.0
    %v1623 = vand.u32 %v1071, 4294901760
    %1624 = vmatpush1.msra.mxu0 %v1623
    %1625 = vmatprep.subr.mxu0 0.0
    %v1626 = vand.u32 %v1072, 4294901760
    %1627 = vmatpush1.msra.mxu0 %v1626
    %1628 = vmatprep.subr.mxu0 0.0
    %v1629 = vand.u32 %v1073, 4294901760
    %1630 = vmatpush1.msra.mxu0 %v1629
    %1631 = vmatprep.subr.mxu0 0.0
    %v1632 = vand.u32 %v1074, 4294901760
    %1633 = vmatpush1.msra.mxu0 %v1632
    %1634 = vmatprep.subr.mxu0 0.0
    %v1635 = vand.u32 %v1075, 4294901760
    %1636 = vmatpush1.msra.mxu0 %v1635
    %1637 = vmatprep.subr.mxu0 0.0
    %v1638 = vand.u32 %v1076, 4294901760
    %1639 = vmatpush1.msra.mxu0 %v1638
    %1640 = vmatprep.subr.mxu0 0.0
    %v1641 = vand.u32 %v1077, 4294901760
    %1642 = vmatpush1.msra.mxu0 %v1641
    %1643 = vmatprep.subr.mxu0 0.0
    %v1644 = vand.u32 %v1078, 4294901760
    %1645 = vmatpush1.msra.mxu0 %v1644
    %1646 = vmatprep.subr.mxu0 0.0
    %1647 = vmatpush1.msra.mxu0 0.0
    %1648 = vmatprep.subr.mxu0 0.0
    %1649 = vmatpush1.msra.mxu0 0.0
    %v1650 = vand.u32 %v1088, 4294901760
    %v1651 = vsub.f32 %v1088, %v1650
    %v1652 = vand.u32 %v1651, 4294901760
    %1653 = vmatprep.mubr.f32.mxu0 %v1652
    %v1654 = vand.u32 %v1047, 4294901760
    %v1655 = vsub.f32 %v1047, %v1654
    %v1656 = vand.u32 %v1655, 4294901760
    %1657 = vmatmul.mubr.f32.gmra.mrb[0].mxu0 %v1656
    %v1658 = vpop.f32.mrb[0].mxu0
    %v1659 = vadd.f32 %v1553, %v1658
    %v1660 = vpop.f32.mrb[0].mxu0
    %1661 = vdwg.mxu0
    %1662 = vmatprep.subr.mxu0 0.0
    %v1663 = vand.u32 %v1049, 4294901760
    %v1664 = vsub.f32 %v1049, %v1663
    %v1665 = vand.u32 %v1664, 4294901760
    %1666 = vmatpush1.msra.mxu0 %v1665
    %1667 = vmatprep.subr.mxu0 0.0
    %v1668 = vand.u32 %v1050, 4294901760
    %v1669 = vsub.f32 %v1050, %v1668
    %v1670 = vand.u32 %v1669, 4294901760
    %1671 = vmatpush1.msra.mxu0 %v1670
    %1672 = vmatprep.subr.mxu0 0.0
    %v1673 = vand.u32 %v1051, 4294901760
    %v1674 = vsub.f32 %v1051, %v1673
    %v1675 = vand.u32 %v1674, 4294901760
    %1676 = vmatpush1.msra.mxu0 %v1675
    %1677 = vmatprep.subr.mxu0 0.0
    %v1678 = vand.u32 %v1052, 4294901760
    %v1679 = vsub.f32 %v1052, %v1678
    %v1680 = vand.u32 %v1679, 4294901760
    %1681 = vmatpush1.msra.mxu0 %v1680
    %1682 = vmatprep.subr.mxu0 0.0
    %v1683 = vand.u32 %v1053, 4294901760
    %v1684 = vsub.f32 %v1053, %v1683
    %v1685 = vand.u32 %v1684, 4294901760
    %1686 = vmatpush1.msra.mxu0 %v1685
    %1687 = vmatprep.subr.mxu0 0.0
    %v1688 = vand.u32 %v1054, 4294901760
    %v1689 = vsub.f32 %v1054, %v1688
    %v1690 = vand.u32 %v1689, 4294901760
    %1691 = vmatpush1.msra.mxu0 %v1690
    %1692 = vmatprep.subr.mxu0 0.0
    %v1693 = vand.u32 %v1055, 4294901760
    %v1694 = vsub.f32 %v1055, %v1693
    %v1695 = vand.u32 %v1694, 4294901760
    %1696 = vmatpush1.msra.mxu0 %v1695
    %1697 = vmatprep.subr.mxu0 0.0
    %v1698 = vand.u32 %v1056, 4294901760
    %v1699 = vsub.f32 %v1056, %v1698
    %v1700 = vand.u32 %v1699, 4294901760
    %1701 = vmatpush1.msra.mxu0 %v1700
    %1702 = vmatprep.subr.mxu0 0.0
    %v1703 = vand.u32 %v1057, 4294901760
    %v1704 = vsub.f32 %v1057, %v1703
    %v1705 = vand.u32 %v1704, 4294901760
    %1706 = vmatpush1.msra.mxu0 %v1705
    %1707 = vmatprep.subr.mxu0 0.0
    %v1708 = vand.u32 %v1058, 4294901760
    %v1709 = vsub.f32 %v1058, %v1708
    %v1710 = vand.u32 %v1709, 4294901760
    %1711 = vmatpush1.msra.mxu0 %v1710
    %1712 = vmatprep.subr.mxu0 0.0
    %v1713 = vand.u32 %v1059, 4294901760
    %v1714 = vsub.f32 %v1059, %v1713
    %v1715 = vand.u32 %v1714, 4294901760
    %1716 = vmatpush1.msra.mxu0 %v1715
    %1717 = vmatprep.subr.mxu0 0.0
    %v1718 = vand.u32 %v1060, 4294901760
    %v1719 = vsub.f32 %v1060, %v1718
    %v1720 = vand.u32 %v1719, 4294901760
    %1721 = vmatpush1.msra.mxu0 %v1720
    %1722 = vmatprep.subr.mxu0 0.0
    %v1723 = vand.u32 %v1061, 4294901760
    %v1724 = vsub.f32 %v1061, %v1723
    %v1725 = vand.u32 %v1724, 4294901760
    %1726 = vmatpush1.msra.mxu0 %v1725
    %1727 = vmatprep.subr.mxu0 0.0
    %v1728 = vand.u32 %v1062, 4294901760
    %v1729 = vsub.f32 %v1062, %v1728
    %v1730 = vand.u32 %v1729, 4294901760
    %1731 = vmatpush1.msra.mxu0 %v1730
    %1732 = vmatprep.subr.mxu0 0.0
    %v1733 = vand.u32 %v1063, 4294901760
    %v1734 = vsub.f32 %v1063, %v1733
    %v1735 = vand.u32 %v1734, 4294901760
    %1736 = vmatpush1.msra.mxu0 %v1735
    %1737 = vmatprep.subr.mxu0 0.0
    %v1738 = vand.u32 %v1064, 4294901760
    %v1739 = vsub.f32 %v1064, %v1738
    %v1740 = vand.u32 %v1739, 4294901760
    %1741 = vmatpush1.msra.mxu0 %v1740
    %1742 = vmatprep.subr.mxu0 0.0
    %v1743 = vand.u32 %v1065, 4294901760
    %v1744 = vsub.f32 %v1065, %v1743
    %v1745 = vand.u32 %v1744, 4294901760
    %1746 = vmatpush1.msra.mxu0 %v1745
    %1747 = vmatprep.subr.mxu0 0.0
    %v1748 = vand.u32 %v1066, 4294901760
    %v1749 = vsub.f32 %v1066, %v1748
    %v1750 = vand.u32 %v1749, 4294901760
    %1751 = vmatpush1.msra.mxu0 %v1750
    %1752 = vmatprep.subr.mxu0 0.0
    %v1753 = vand.u32 %v1067, 4294901760
    %v1754 = vsub.f32 %v1067, %v1753
    %v1755 = vand.u32 %v1754, 4294901760
    %1756 = vmatpush1.msra.mxu0 %v1755
    %1757 = vmatprep.subr.mxu0 0.0
    %v1758 = vand.u32 %v1068, 4294901760
    %v1759 = vsub.f32 %v1068, %v1758
    %v1760 = vand.u32 %v1759, 4294901760
    %1761 = vmatpush1.msra.mxu0 %v1760
    %1762 = vmatprep.subr.mxu0 0.0
    %v1763 = vand.u32 %v1069, 4294901760
    %v1764 = vsub.f32 %v1069, %v1763
    %v1765 = vand.u32 %v1764, 4294901760
    %1766 = vmatpush1.msra.mxu0 %v1765
    %1767 = vmatprep.subr.mxu0 0.0
    %v1768 = vand.u32 %v1070, 4294901760
    %v1769 = vsub.f32 %v1070, %v1768
    %v1770 = vand.u32 %v1769, 4294901760
    %1771 = vmatpush1.msra.mxu0 %v1770
    %1772 = vmatprep.subr.mxu0 0.0
    %v1773 = vand.u32 %v1071, 4294901760
    %v1774 = vsub.f32 %v1071, %v1773
    %v1775 = vand.u32 %v1774, 4294901760
    %1776 = vmatpush1.msra.mxu0 %v1775
    %1777 = vmatprep.subr.mxu0 0.0
    %v1778 = vand.u32 %v1072, 4294901760
    %v1779 = vsub.f32 %v1072, %v1778
    %v1780 = vand.u32 %v1779, 4294901760
    %1781 = vmatpush1.msra.mxu0 %v1780
    %1782 = vmatprep.subr.mxu0 0.0
    %v1783 = vand.u32 %v1073, 4294901760
    %v1784 = vsub.f32 %v1073, %v1783
    %v1785 = vand.u32 %v1784, 4294901760
    %1786 = vmatpush1.msra.mxu0 %v1785
    %1787 = vmatprep.subr.mxu0 0.0
    %v1788 = vand.u32 %v1074, 4294901760
    %v1789 = vsub.f32 %v1074, %v1788
    %v1790 = vand.u32 %v1789, 4294901760
    %1791 = vmatpush1.msra.mxu0 %v1790
    %1792 = vmatprep.subr.mxu0 0.0
    %v1793 = vand.u32 %v1075, 4294901760
    %v1794 = vsub.f32 %v1075, %v1793
    %v1795 = vand.u32 %v1794, 4294901760
    %1796 = vmatpush1.msra.mxu0 %v1795
    %1797 = vmatprep.subr.mxu0 0.0
    %v1798 = vand.u32 %v1076, 4294901760
    %v1799 = vsub.f32 %v1076, %v1798
    %v1800 = vand.u32 %v1799, 4294901760
    %1801 = vmatpush1.msra.mxu0 %v1800
    %1802 = vmatprep.subr.mxu0 0.0
    %v1803 = vand.u32 %v1077, 4294901760
    %v1804 = vsub.f32 %v1077, %v1803
    %v1805 = vand.u32 %v1804, 4294901760
    %1806 = vmatpush1.msra.mxu0 %v1805
    %1807 = vmatprep.subr.mxu0 0.0
    %v1808 = vand.u32 %v1078, 4294901760
    %v1809 = vsub.f32 %v1078, %v1808
    %v1810 = vand.u32 %v1809, 4294901760
    %1811 = vmatpush1.msra.mxu0 %v1810
    %1812 = vmatprep.subr.mxu0 0.0
    %1813 = vmatpush1.msra.mxu0 0.0
    %1814 = vmatprep.subr.mxu0 0.0
    %1815 = vmatpush1.msra.mxu0 0.0
    %v1816 = vand.u32 %v1088, 4294901760
    %1817 = vmatprep.mubr.f32.mxu0 %v1816
    %v1818 = vand.u32 %v1047, 4294901760
    %1819 = vmatmul.mubr.f32.gmra.mrb[0].mxu0 %v1818
    %v1820 = vpop.f32.mrb[0].mxu0
    %v1821 = vadd.f32 %v1659, %v1820
    %v1822 = vpop.f32.mrb[0].mxu0
    %1823 = vdwg.mxu0
    %1824 = vmatprep.subr.mxu0 0.0
    %v1825 = vand.u32 %v1049, 4294901760
    %1826 = vmatpush1.msra.mxu0 %v1825
    %1827 = vmatprep.subr.mxu0 0.0
    %v1828 = vand.u32 %v1050, 4294901760
    %1829 = vmatpush1.msra.mxu0 %v1828
    %1830 = vmatprep.subr.mxu0 0.0
    %v1831 = vand.u32 %v1051, 4294901760
    %1832 = vmatpush1.msra.mxu0 %v1831
    %1833 = vmatprep.subr.mxu0 0.0
    %v1834 = vand.u32 %v1052, 4294901760
    %1835 = vmatpush1.msra.mxu0 %v1834
    %1836 = vmatprep.subr.mxu0 0.0
    %v1837 = vand.u32 %v1053, 4294901760
    %1838 = vmatpush1.msra.mxu0 %v1837
    %1839 = vmatprep.subr.mxu0 0.0
    %v1840 = vand.u32 %v1054, 4294901760
    %1841 = vmatpush1.msra.mxu0 %v1840
    %1842 = vmatprep.subr.mxu0 0.0
    %v1843 = vand.u32 %v1055, 4294901760
    %1844 = vmatpush1.msra.mxu0 %v1843
    %1845 = vmatprep.subr.mxu0 0.0
    %v1846 = vand.u32 %v1056, 4294901760
    %1847 = vmatpush1.msra.mxu0 %v1846
    %1848 = vmatprep.subr.mxu0 0.0
    %v1849 = vand.u32 %v1057, 4294901760
    %1850 = vmatpush1.msra.mxu0 %v1849
    %1851 = vmatprep.subr.mxu0 0.0
    %v1852 = vand.u32 %v1058, 4294901760
    %1853 = vmatpush1.msra.mxu0 %v1852
    %1854 = vmatprep.subr.mxu0 0.0
    %v1855 = vand.u32 %v1059, 4294901760
    %1856 = vmatpush1.msra.mxu0 %v1855
    %1857 = vmatprep.subr.mxu0 0.0
    %v1858 = vand.u32 %v1060, 4294901760
    %1859 = vmatpush1.msra.mxu0 %v1858
    %1860 = vmatprep.subr.mxu0 0.0
    %v1861 = vand.u32 %v1061, 4294901760
    %1862 = vmatpush1.msra.mxu0 %v1861
    %1863 = vmatprep.subr.mxu0 0.0
    %v1864 = vand.u32 %v1062, 4294901760
    %1865 = vmatpush1.msra.mxu0 %v1864
    %1866 = vmatprep.subr.mxu0 0.0
    %v1867 = vand.u32 %v1063, 4294901760
    %1868 = vmatpush1.msra.mxu0 %v1867
    %1869 = vmatprep.subr.mxu0 0.0
    %v1870 = vand.u32 %v1064, 4294901760
    %1871 = vmatpush1.msra.mxu0 %v1870
    %1872 = vmatprep.subr.mxu0 0.0
    %v1873 = vand.u32 %v1065, 4294901760
    %1874 = vmatpush1.msra.mxu0 %v1873
    %1875 = vmatprep.subr.mxu0 0.0
    %v1876 = vand.u32 %v1066, 4294901760
    %1877 = vmatpush1.msra.mxu0 %v1876
    %1878 = vmatprep.subr.mxu0 0.0
    %v1879 = vand.u32 %v1067, 4294901760
    %1880 = vmatpush1.msra.mxu0 %v1879
    %1881 = vmatprep.subr.mxu0 0.0
    %v1882 = vand.u32 %v1068, 4294901760
    %1883 = vmatpush1.msra.mxu0 %v1882
    %1884 = vmatprep.subr.mxu0 0.0
    %v1885 = vand.u32 %v1069, 4294901760
    %1886 = vmatpush1.msra.mxu0 %v1885
    %1887 = vmatprep.subr.mxu0 0.0
    %v1888 = vand.u32 %v1070, 4294901760
    %1889 = vmatpush1.msra.mxu0 %v1888
    %1890 = vmatprep.subr.mxu0 0.0
    %v1891 = vand.u32 %v1071, 4294901760
    %1892 = vmatpush1.msra.mxu0 %v1891
    %1893 = vmatprep.subr.mxu0 0.0
    %v1894 = vand.u32 %v1072, 4294901760
    %1895 = vmatpush1.msra.mxu0 %v1894
    %1896 = vmatprep.subr.mxu0 0.0
    %v1897 = vand.u32 %v1073, 4294901760
    %1898 = vmatpush1.msra.mxu0 %v1897
    %1899 = vmatprep.subr.mxu0 0.0
    %v1900 = vand.u32 %v1074, 4294901760
    %1901 = vmatpush1.msra.mxu0 %v1900
    %1902 = vmatprep.subr.mxu0 0.0
    %v1903 = vand.u32 %v1075, 4294901760
    %1904 = vmatpush1.msra.mxu0 %v1903
    %1905 = vmatprep.subr.mxu0 0.0
    %v1906 = vand.u32 %v1076, 4294901760
    %1907 = vmatpush1.msra.mxu0 %v1906
    %1908 = vmatprep.subr.mxu0 0.0
    %v1909 = vand.u32 %v1077, 4294901760
    %1910 = vmatpush1.msra.mxu0 %v1909
    %1911 = vmatprep.subr.mxu0 0.0
    %v1912 = vand.u32 %v1078, 4294901760
    %1913 = vmatpush1.msra.mxu0 %v1912
    %1914 = vmatprep.subr.mxu0 0.0
    %1915 = vmatpush1.msra.mxu0 0.0
    %1916 = vmatprep.subr.mxu0 0.0
    %1917 = vmatpush1.msra.mxu0 0.0
    %v1918 = vand.u32 %v1088, 4294901760
    %1919 = vmatprep.mubr.f32.mxu0 %v1918
    %v1920 = vand.u32 %v1047, 4294901760
    %1921 = vmatmul.mubr.f32.gmra.mrb[0].mxu0 %v1920
    %v1922 = vpop.f32.mrb[0].mxu0
    %v1923 = vadd.f32 %v1821, %v1922
    %v1924 = vpop.f32.mrb[0].mxu0
    %1925 = vdwg.mxu0
    %vm1926 = vcmask 392192
    %1927 = vst.msk [vmem:[#allocation2] sm:$0xff] %vm1926, %v1923
    // Predicated region
    $region30: #{tpu_custom_call.1} parent=1 // pred_check
      _
    $region31: #{tpu_custom_call.1} parent=1 // pred_check_branch
      %1929 = sbr.rel (0) target = $region33
    $region32: #{tpu_custom_call.1} parent=1 // pred_region
      %s1931 = ssub.s32 128, 128
      %1932 = vsyncadd [#allocation3], %s1931
      %s1934 = sshll.u32 [#allocation2], 4
      %s1935 = int_to_ptr.vmem [resolvable:$true] %s1934
      %1937 = dma.vmem_to_hbm [thread:$0]  %s1935, 128, %s7, [#allocation3]
    $region33: #{tpu_custom_call.1} parent=1 // pred_fallthru
      _
    // Predicated region
    $region34: #{tpu_custom_call.1} parent=1 // pred_check
      _
    $region35: #{tpu_custom_call.1} parent=1 // pred_check_branch
      %1939 = sbr.rel (0) target = $region37
    $region36: #{tpu_custom_call.1} parent=1 // pred_region
      %1940 = dma.done [#allocation3], 128
    $region37: #{tpu_custom_call.1} parent=1 // pred_fallthru
      _
    %1941 = vsyncpa [#allocation3], 1

</llo_original>
